<compile_context>
chip_gen: v5e
topology: v5e:2x2
jax: 0.10.0
libtpu: 0.0.40
codegen_flags: <defaults>
</compile_context>

<pallas_src>
import jax
import jax.numpy as jnp
from jax import lax
from jax.experimental import pallas as pl
from jax.experimental.pallas import tpu as pltpu

# ----------------------------- config (small) -------------------------------
T = 8                # number of tokens (single flattened sequence)
H = 32               # hidden_size
NUM_HEADS = 4        # num_attention_heads
HEAD_DIM = H // NUM_HEADS
INTER = 64           # intermediate_size
NUM_LAYERS = 2       # num_hidden_layers
LN_EPS = 1e-12       # BertConfig.layer_norm_eps default
SCALING = HEAD_DIM ** -0.5

# lane-dense padded sizes (multiples of 128)
H_P = 128
INTER_P = 128
W_COLS = 6 * H_P     # wqkv(3*128) | wo(128) | wi(128) | wo2(128)
B_COLS = 3 * H_P     # bqkv row is 3*128 wide; the other 7 rows use cols 0:128


# ----------------------------- fused kernel ---------------------------------
def bert_encoder_kernel(x_ref, w_ref, b_ref, out_ref):
    # Constant lane / head masks, hoisted out of the layer loop.
    col = lax.broadcasted_iota(jnp.int32, (1, H_P), 1)
    lane_mask = (col < H).astype(jnp.float32)              # real hidden columns
    head_masks = [
        ((col >= hd * HEAD_DIM) & (col < (hd + 1) * HEAD_DIM)).astype(jnp.float32)
        for hd in range(NUM_HEADS)
    ]

    def layer_norm(x, gamma, beta):
        # Masked LayerNorm over the H real columns; padded columns stay exactly
        # zero because gamma/beta (and x) are zero in the padded lanes.
        mu = jnp.sum(x, axis=-1, keepdims=True) * (1.0 / H)
        centered = (x - mu) * lane_mask
        var = jnp.sum(centered * centered, axis=-1, keepdims=True) * (1.0 / H)
        return centered * lax.rsqrt(var + LN_EPS) * gamma + beta

    h = x_ref[...]                                          # (T, H_P) f32, zero-padded

    for l in range(NUM_LAYERS):                             # static unrolled loop
        # ---- slice this layer's slabs (static, 128-lane aligned => free) ----
        wqkv = w_ref[l, :, 0 * H_P:3 * H_P]                 # (H_P, 3*H_P) bf16
        wo   = w_ref[l, :, 3 * H_P:4 * H_P]                 # (H_P, H_P)   bf16
        wi   = w_ref[l, :, 4 * H_P:5 * H_P]                 # (H_P, INTER_P) bf16
        wo2  = w_ref[l, :, 5 * H_P:6 * H_P]                 # (INTER_P, H_P) bf16
        bqkv = b_ref[l, 0:1, :]                             # (1, 3*H_P) f32
        bo   = b_ref[l, 1:2, 0:H_P]
        g1   = b_ref[l, 2:3, 0:H_P]
        b1   = b_ref[l, 3:4, 0:H_P]
        bi   = b_ref[l, 4:5, 0:INTER_P]
        bo2  = b_ref[l, 5:6, 0:H_P]
        g2   = b_ref[l, 6:7, 0:H_P]
        b2   = b_ref[l, 7:8, 0:H_P]

        h_bf = h.astype(jnp.bfloat16)

        # ---- BertSelfAttention: qkv projection (bf16 MXU, f32 accumulate) ----
        qkv = jnp.dot(h_bf, wqkv, preferred_element_type=jnp.float32) + bqkv
        q = qkv[:, 0 * H_P:1 * H_P]
        k = qkv[:, 1 * H_P:2 * H_P]
        v = qkv[:, 2 * H_P:3 * H_P]
        q_bf = q.astype(jnp.bfloat16)

        # ---- multi-head bidirectional attention (encoder-only, no mask) ----
        # Per-head contraction via full-width lane-masked K/V: no lane
        # sub-slicing, no concatenate; head outputs combine with a plain add.
        ctx = jnp.zeros((T, H_P), jnp.float32)
        for hd in range(NUM_HEADS):
            m = head_masks[hd]
            k_h = (k * m).astype(jnp.bfloat16)
            v_h = (v * m).astype(jnp.bfloat16)
            # scores = Q @ (K*mask)^T -> only head hd's lanes contribute.
            s = lax.dot_general(q_bf, k_h, (((1,), (1,)), ((), ())),
                                preferred_element_type=jnp.float32) * SCALING
            s = s - jnp.max(s, axis=-1, keepdims=True)
            p = jnp.exp(s)
            p = p * pl.reciprocal(jnp.sum(p, axis=-1, keepdims=True), approx=True)
            ctx = ctx + jnp.dot(p.astype(jnp.bfloat16), v_h,
                                preferred_element_type=jnp.float32)      # (T, H_P)

        # ---- BertSelfOutput: dense + add & LayerNorm ----
        attn_dense = jnp.dot(ctx.astype(jnp.bfloat16), wo,
                             preferred_element_type=jnp.float32) + bo
        attn_out = layer_norm(attn_dense + h, g1, b1)

        # ---- BertIntermediate: dense + exact (erf) GELU ----
        inter = jnp.dot(attn_out.astype(jnp.bfloat16), wi,
                        preferred_element_type=jnp.float32) + bi
        inter = 0.5 * inter * (1.0 + lax.erf(inter * (1.0 / jnp.sqrt(2.0))))

        # ---- BertOutput: dense + add & LayerNorm (residual from attn_out) ----
        out = jnp.dot(inter.astype(jnp.bfloat16), wo2,
                      preferred_element_type=jnp.float32) + bo2
        h = layer_norm(out + attn_out, g2, b2)

    out_ref[...] = h


def bert_encoder_pallas(x_padded, w_slab, b_slab):
    """x_padded: (T, H_P) f32.  w_slab: (L, H_P, W_COLS) bf16.
    b_slab: (L, 8, B_COLS) f32."""
    return pl.pallas_call(
        bert_encoder_kernel,
        out_shape=jax.ShapeDtypeStruct((T, H_P), jnp.float32),
        grid=(1,),
        in_specs=[
            pl.BlockSpec((T, H_P), lambda i: (0, 0)),
            pl.BlockSpec((NUM_LAYERS, H_P, W_COLS), lambda i: (0, 0, 0)),
            pl.BlockSpec((NUM_LAYERS, 8, B_COLS), lambda i: (0, 0, 0)),
        ],
        out_specs=pl.BlockSpec((T, H_P), lambda i: (0, 0)),
        compiler_params=pltpu.CompilerParams(
            dimension_semantics=("arbitrary",)),
    )(x_padded, w_slab, b_slab)


# ----------------------------- reference (plain JAX) ------------------------
def _bdot(a, b):
    return jnp.dot(a.astype(jnp.bfloat16), b.astype(jnp.bfloat16),
                   preferred_element_type=jnp.float32)


def _layer_norm_ref(x, gamma, beta):
    mu = jnp.mean(x, axis=-1, keepdims=True)
    var = jnp.mean((x - mu) ** 2, axis=-1, keepdims=True)
    return (x - mu) * lax.rsqrt(var + LN_EPS) * gamma + beta


def _gelu_ref(x):
    return 0.5 * x * (1.0 + lax.erf(x / jnp.sqrt(2.0)))


def bert_layer_ref(x, params):
    (wqkv, bqkv, wo, bo, g1, b1, wi, bi, wo2, bo2, g2, b2) = params
    qkv = _bdot(x, wqkv) + bqkv
    q, k, v = qkv[:, :H], qkv[:, H:2 * H], qkv[:, 2 * H:]
    qh = q.reshape(T, NUM_HEADS, HEAD_DIM).astype(jnp.bfloat16)
    kh = k.reshape(T, NUM_HEADS, HEAD_DIM).astype(jnp.bfloat16)
    vh = v.reshape(T, NUM_HEADS, HEAD_DIM).astype(jnp.bfloat16)
    s = jnp.einsum('qhd,khd->hqk', qh, kh,
                   preferred_element_type=jnp.float32) * SCALING
    p = jax.nn.softmax(s, axis=-1)
    ctx = jnp.einsum('hqk,khd->qhd', p.astype(jnp.bfloat16), vh,
                     preferred_element_type=jnp.float32).reshape(T, H)
    attn_out = _layer_norm_ref(_bdot(ctx, wo) + bo + x, g1, b1)
    inter = _gelu_ref(_bdot(attn_out, wi) + bi)
    return _layer_norm_ref(_bdot(inter, wo2) + bo2 + attn_out, g2, b2)


def bert_encoder_ref(x, layer_params):
    for params in layer_params:
        x = bert_layer_ref(x, params)
    return x


# ----------------------------- params / packing -----------------------------
def init_layer_params(key):
    ks = jax.random.split(key, 12)
    scale = 0.05
    wqkv = scale * jax.random.normal(ks[0], (H, 3 * H), jnp.float32)
    bqkv = scale * jax.random.normal(ks[1], (1, 3 * H), jnp.float32)
    wo = scale * jax.random.normal(ks[2], (H, H), jnp.float32)
    bo = scale * jax.random.normal(ks[3], (1, H), jnp.float32)
    g1 = 1.0 + scale * jax.random.normal(ks[4], (1, H), jnp.float32)
    b1 = scale * jax.random.normal(ks[5], (1, H), jnp.float32)
    wi = scale * jax.random.normal(ks[6], (H, INTER), jnp.float32)
    bi = scale * jax.random.normal(ks[7], (1, INTER), jnp.float32)
    wo2 = scale * jax.random.normal(ks[8], (INTER, H), jnp.float32)
    bo2 = scale * jax.random.normal(ks[9], (1, H), jnp.float32)
    g2 = 1.0 + scale * jax.random.normal(ks[10], (1, H), jnp.float32)
    b2 = scale * jax.random.normal(ks[11], (1, H), jnp.float32)
    return (wqkv, bqkv, wo, bo, g1, b1, wi, bi, wo2, bo2, g2, b2)


def _pad2(a, rows, cols):
    out = jnp.zeros((rows, cols), a.dtype)
    return out.at[:a.shape[0], :a.shape[1]].set(a)


def pack_layer_params(p):
    """Pack one layer's params into the coalesced, zero-padded slabs.

    Returns (w_slab (H_P, W_COLS) bf16, b_slab (8, B_COLS) f32).
    Zero padding outside real rows/cols is the invariant the kernel's masked
    LayerNorm relies on."""
    (wqkv, bqkv, wo, bo, g1, b1, wi, bi, wo2, bo2, g2, b2) = p
    wq, wk, wv = wqkv[:, :H], wqkv[:, H:2 * H], wqkv[:, 2 * H:]
    bq, bk, bv = bqkv[:, :H], bqkv[:, H:2 * H], bqkv[:, 2 * H:]

    w_slab = jnp.zeros((H_P, W_COLS), jnp.float32)
    w_slab = w_slab.at[:H, 0 * H_P:0 * H_P + H].set(wq)
    w_slab = w_slab.at[:H, 1 * H_P:1 * H_P + H].set(wk)
    w_slab = w_slab.at[:H, 2 * H_P:2 * H_P + H].set(wv)
    w_slab = w_slab.at[:H, 3 * H_P:3 * H_P + H].set(wo)
    w_slab = w_slab.at[:H, 4 * H_P:4 * H_P + INTER].set(wi)
    w_slab = w_slab.at[:INTER, 5 * H_P:5 * H_P + H].set(wo2)

    b_slab = jnp.zeros((8, B_COLS), jnp.float32)
    b_slab = b_slab.at[0, 0 * H_P:0 * H_P + H].set(bq[0])
    b_slab = b_slab.at[0, 1 * H_P:1 * H_P + H].set(bk[0])
    b_slab = b_slab.at[0, 2 * H_P:2 * H_P + H].set(bv[0])
    b_slab = b_slab.at[1, :H].set(bo[0])
    b_slab = b_slab.at[2, :H].set(g1[0])
    b_slab = b_slab.at[3, :H].set(b1[0])
    b_slab = b_slab.at[4, :INTER].set(bi[0])
    b_slab = b_slab.at[5, :H].set(bo2[0])
    b_slab = b_slab.at[6, :H].set(g2[0])
    b_slab = b_slab.at[7, :H].set(b2[0])
    return w_slab.astype(jnp.bfloat16), b_slab


def pack_all_layers(layer_params):
    packed = [pack_layer_params(p) for p in layer_params]
    w_all = jnp.stack([w for (w, _) in packed], axis=0)   # (L, H_P, W_COLS) bf16
    b_all = jnp.stack([b for (_, b) in packed], axis=0)   # (L, 8, B_COLS) f32
    return w_all, b_all


if __name__ == "__main__":
    root = jax.random.PRNGKey(0)
    kx, kp = jax.random.split(root)
    x = jax.random.normal(kx, (T, H), jnp.float32)
    layer_keys = jax.random.split(kp, NUM_LAYERS)
    layer_params = [init_layer_params(k) for k in layer_keys]

    x_padded = _pad2(x, T, H_P)
    w_slab, b_slab = pack_all_layers(layer_params)

    out_padded = jax.block_until_ready(bert_encoder_pallas(x_padded, w_slab, b_slab))
    out = out_padded[:, :H]

    ref = bert_encoder_ref(x, layer_params)
    assert out.shape == (T, H)
    max_err = float(jnp.max(jnp.abs(out - ref)))
    assert jnp.allclose(out, ref, atol=1e-2, rtol=1e-2), \
        f"mismatch vs reference, max abs err {max_err}"
    print("KERNEL_OK")
</pallas_src>

<mosaic_0001>
module attributes {stable_mosaic.version = 11 : i64} {
  func.func @bert_encoder_kernel(%arg0: i32, %arg1: memref<8x128xf32, #tpu.memory_space<vmem>>, %arg2: memref<2x128x768xbf16, #tpu.memory_space<vmem>>, %arg3: memref<2x8x384xf32, #tpu.memory_space<vmem>>, %arg4: memref<8x128xf32, #tpu.memory_space<vmem>>) attributes {dimension_semantics = [#tpu.dimension_semantics<arbitrary>], iteration_bounds = array<i64: 1>, scalar_prefetch = 0 : i64, scratch_operands = 0 : i64, tpu.core_type = #tpu.core_type<tc>, window_params = [{pipeline_mode = #tpu.pipeline_mode<synchronous>, transform_indices = @transform_0, window_bounds = array<i64: 8, 128>}, {pipeline_mode = #tpu.pipeline_mode<synchronous>, transform_indices = @transform_1, window_bounds = array<i64: 2, 128, 768>}, {pipeline_mode = #tpu.pipeline_mode<synchronous>, transform_indices = @transform_2, window_bounds = array<i64: 2, 8, 384>}, {pipeline_mode = #tpu.pipeline_mode<synchronous>, transform_indices = @transform_3, window_bounds = array<i64: 8, 128>}]} {
    %0 = tpu.iota {dimensions = array<i32: 1>} : vector<1x128xi32>
    %c32_i32 = arith.constant 32 : i32
    %1 = vector.broadcast %c32_i32 : i32 to vector<1x128xi32>
    %2 = arith.cmpi slt, %0, %1 : vector<1x128xi32>
    %3 = arith.extui %2 : vector<1x128xi1> to vector<1x128xi32>
    %4 = arith.sitofp %3 : vector<1x128xi32> to vector<1x128xf32>
    %c0_i32 = arith.constant 0 : i32
    %5 = vector.broadcast %c0_i32 : i32 to vector<1x128xi32>
    %6 = arith.cmpi sge, %0, %5 : vector<1x128xi32>
    %c8_i32 = arith.constant 8 : i32
    %7 = vector.broadcast %c8_i32 : i32 to vector<1x128xi32>
    %8 = arith.cmpi slt, %0, %7 : vector<1x128xi32>
    %9 = arith.andi %6, %8 : vector<1x128xi1>
    %10 = arith.extui %9 : vector<1x128xi1> to vector<1x128xi32>
    %11 = arith.sitofp %10 : vector<1x128xi32> to vector<1x128xf32>
    %c8_i32_0 = arith.constant 8 : i32
    %12 = vector.broadcast %c8_i32_0 : i32 to vector<1x128xi32>
    %13 = arith.cmpi sge, %0, %12 : vector<1x128xi32>
    %c16_i32 = arith.constant 16 : i32
    %14 = vector.broadcast %c16_i32 : i32 to vector<1x128xi32>
    %15 = arith.cmpi slt, %0, %14 : vector<1x128xi32>
    %16 = arith.andi %13, %15 : vector<1x128xi1>
    %17 = arith.extui %16 : vector<1x128xi1> to vector<1x128xi32>
    %18 = arith.sitofp %17 : vector<1x128xi32> to vector<1x128xf32>
    %c16_i32_1 = arith.constant 16 : i32
    %19 = vector.broadcast %c16_i32_1 : i32 to vector<1x128xi32>
    %20 = arith.cmpi sge, %0, %19 : vector<1x128xi32>
    %c24_i32 = arith.constant 24 : i32
    %21 = vector.broadcast %c24_i32 : i32 to vector<1x128xi32>
    %22 = arith.cmpi slt, %0, %21 : vector<1x128xi32>
    %23 = arith.andi %20, %22 : vector<1x128xi1>
    %24 = arith.extui %23 : vector<1x128xi1> to vector<1x128xi32>
    %25 = arith.sitofp %24 : vector<1x128xi32> to vector<1x128xf32>
    %c24_i32_2 = arith.constant 24 : i32
    %26 = vector.broadcast %c24_i32_2 : i32 to vector<1x128xi32>
    %27 = arith.cmpi sge, %0, %26 : vector<1x128xi32>
    %c32_i32_3 = arith.constant 32 : i32
    %28 = vector.broadcast %c32_i32_3 : i32 to vector<1x128xi32>
    %29 = arith.cmpi slt, %0, %28 : vector<1x128xi32>
    %30 = arith.andi %27, %29 : vector<1x128xi1>
    %31 = arith.extui %30 : vector<1x128xi1> to vector<1x128xi32>
    %32 = arith.sitofp %31 : vector<1x128xi32> to vector<1x128xf32>
    %c0 = arith.constant 0 : index
    %c0_4 = arith.constant 0 : index
    %33 = vector.load %arg1[%c0, %c0_4] : memref<8x128xf32, #tpu.memory_space<vmem>>, vector<8x128xf32>
    %c0_5 = arith.constant 0 : index
    %c0_6 = arith.constant 0 : index
    %c0_7 = arith.constant 0 : index
    %34 = vector.load %arg2[%c0_5, %c0_6, %c0_7] : memref<2x128x768xbf16, #tpu.memory_space<vmem>>, vector<1x128x384xbf16>
    %35 = vector.shape_cast %34 : vector<1x128x384xbf16> to vector<128x384xbf16>
    %c0_8 = arith.constant 0 : index
    %c0_9 = arith.constant 0 : index
    %c384 = arith.constant 384 : index
    %36 = vector.load %arg2[%c0_8, %c0_9, %c384] : memref<2x128x768xbf16, #tpu.memory_space<vmem>>, vector<1x128x128xbf16>
    %37 = vector.shape_cast %36 : vector<1x128x128xbf16> to vector<128x128xbf16>
    %c0_10 = arith.constant 0 : index
    %c0_11 = arith.constant 0 : index
    %c512 = arith.constant 512 : index
    %38 = vector.load %arg2[%c0_10, %c0_11, %c512] : memref<2x128x768xbf16, #tpu.memory_space<vmem>>, vector<1x128x128xbf16>
    %39 = vector.shape_cast %38 : vector<1x128x128xbf16> to vector<128x128xbf16>
    %c0_12 = arith.constant 0 : index
    %c0_13 = arith.constant 0 : index
    %c640 = arith.constant 640 : index
    %40 = vector.load %arg2[%c0_12, %c0_13, %c640] : memref<2x128x768xbf16, #tpu.memory_space<vmem>>, vector<1x128x128xbf16>
    %41 = vector.shape_cast %40 : vector<1x128x128xbf16> to vector<128x128xbf16>
    %c0_14 = arith.constant 0 : index
    %c0_15 = arith.constant 0 : index
    %c0_16 = arith.constant 0 : index
    %42 = vector.load %arg3[%c0_14, %c0_15, %c0_16] : memref<2x8x384xf32, #tpu.memory_space<vmem>>, vector<1x1x384xf32>
    %43 = vector.shape_cast %42 : vector<1x1x384xf32> to vector<1x384xf32>
    %c0_17 = arith.constant 0 : index
    %c1 = arith.constant 1 : index
    %c0_18 = arith.constant 0 : index
    %44 = vector.load %arg3[%c0_17, %c1, %c0_18] : memref<2x8x384xf32, #tpu.memory_space<vmem>>, vector<1x1x128xf32>
    %45 = vector.shape_cast %44 : vector<1x1x128xf32> to vector<1x128xf32>
    %c0_19 = arith.constant 0 : index
    %c2 = arith.constant 2 : index
    %c0_20 = arith.constant 0 : index
    %46 = vector.load %arg3[%c0_19, %c2, %c0_20] : memref<2x8x384xf32, #tpu.memory_space<vmem>>, vector<1x1x128xf32>
    %47 = vector.shape_cast %46 : vector<1x1x128xf32> to vector<1x128xf32>
    %c0_21 = arith.constant 0 : index
    %c3 = arith.constant 3 : index
    %c0_22 = arith.constant 0 : index
    %48 = vector.load %arg3[%c0_21, %c3, %c0_22] : memref<2x8x384xf32, #tpu.memory_space<vmem>>, vector<1x1x128xf32>
    %49 = vector.shape_cast %48 : vector<1x1x128xf32> to vector<1x128xf32>
    %c0_23 = arith.constant 0 : index
    %c4 = arith.constant 4 : index
    %c0_24 = arith.constant 0 : index
    %50 = vector.load %arg3[%c0_23, %c4, %c0_24] : memref<2x8x384xf32, #tpu.memory_space<vmem>>, vector<1x1x128xf32>
    %51 = vector.shape_cast %50 : vector<1x1x128xf32> to vector<1x128xf32>
    %c0_25 = arith.constant 0 : index
    %c5 = arith.constant 5 : index
    %c0_26 = arith.constant 0 : index
    %52 = vector.load %arg3[%c0_25, %c5, %c0_26] : memref<2x8x384xf32, #tpu.memory_space<vmem>>, vector<1x1x128xf32>
    %53 = vector.shape_cast %52 : vector<1x1x128xf32> to vector<1x128xf32>
    %c0_27 = arith.constant 0 : index
    %c6 = arith.constant 6 : index
    %c0_28 = arith.constant 0 : index
    %54 = vector.load %arg3[%c0_27, %c6, %c0_28] : memref<2x8x384xf32, #tpu.memory_space<vmem>>, vector<1x1x128xf32>
    %55 = vector.shape_cast %54 : vector<1x1x128xf32> to vector<1x128xf32>
    %c0_29 = arith.constant 0 : index
    %c7 = arith.constant 7 : index
    %c0_30 = arith.constant 0 : index
    %56 = vector.load %arg3[%c0_29, %c7, %c0_30] : memref<2x8x384xf32, #tpu.memory_space<vmem>>, vector<1x1x128xf32>
    %57 = vector.shape_cast %56 : vector<1x1x128xf32> to vector<1x128xf32>
    %58 = arith.truncf %33 : vector<8x128xf32> to vector<8x128xbf16>
    %cst = arith.constant dense<0.000000e+00> : vector<8x384xf32>
    %59 = tpu.matmul %58, %35, %cst {dimension_numbers = #tpu.dot_dimension_numbers<[1], [0], [0], [1], [0, 0, 1, 1], [], []>} : vector<8x128xbf16>, vector<128x384xbf16>, vector<8x384xf32> -> vector<8x384xf32>
    %60 = vector.broadcast %43 : vector<1x384xf32> to vector<8x384xf32>
    %61 = arith.addf %59, %60 : vector<8x384xf32>
    %62 = vector.extract_strided_slice %61 {offsets = [0, 0], sizes = [8, 128], strides = [1, 1]} : vector<8x384xf32> to vector<8x128xf32>
    %63 = vector.extract_strided_slice %61 {offsets = [0, 128], sizes = [8, 128], strides = [1, 1]} : vector<8x384xf32> to vector<8x128xf32>
    %64 = vector.extract_strided_slice %61 {offsets = [0, 256], sizes = [8, 128], strides = [1, 1]} : vector<8x384xf32> to vector<8x128xf32>
    %65 = arith.truncf %62 : vector<8x128xf32> to vector<8x128xbf16>
    %cst_31 = arith.constant 0.000000e+00 : f32
    %66 = vector.broadcast %cst_31 : f32 to vector<8x128xf32>
    %67 = vector.broadcast %11 : vector<1x128xf32> to vector<8x128xf32>
    %68 = arith.mulf %63, %67 : vector<8x128xf32>
    %69 = arith.truncf %68 : vector<8x128xf32> to vector<8x128xbf16>
    %70 = vector.broadcast %11 : vector<1x128xf32> to vector<8x128xf32>
    %71 = arith.mulf %64, %70 : vector<8x128xf32>
    %72 = arith.truncf %71 : vector<8x128xf32> to vector<8x128xbf16>
    %cst_32 = arith.constant dense<0.000000e+00> : vector<8x8xf32>
    %73 = tpu.matmul %65, %69, %cst_32 {dimension_numbers = #tpu.dot_dimension_numbers<[1], [1], [0], [0], [0, 0, 1, 0], [], []>} : vector<8x128xbf16>, vector<8x128xbf16>, vector<8x8xf32> -> vector<8x8xf32>
    %cst_33 = arith.constant 0.353553385 : f32
    %74 = vector.broadcast %cst_33 : f32 to vector<8x8xf32>
    %75 = arith.mulf %73, %74 : vector<8x8xf32>
    %cst_34 = arith.constant dense<0xFF800000> : vector<8xf32>
    %76 = vector.multi_reduction <maximumf>, %75, %cst_34 [1] : vector<8x8xf32> to vector<8xf32>
    %77 = vector.shape_cast %76 : vector<8xf32> to vector<8x1xf32>
    %78 = vector.broadcast %77 : vector<8x1xf32> to vector<8x8xf32>
    %79 = arith.subf %75, %78 : vector<8x8xf32>
    %80 = math.exp %79 : vector<8x8xf32>
    %cst_35 = arith.constant dense<0.000000e+00> : vector<8xf32>
    %81 = vector.multi_reduction <add>, %80, %cst_35 [1] : vector<8x8xf32> to vector<8xf32>
    %82 = vector.shape_cast %81 : vector<8xf32> to vector<8x1xf32>
    %83 = tpu.reciprocal %82 {approx = true} : vector<8x1xf32> -> vector<8x1xf32>
    %84 = vector.broadcast %83 : vector<8x1xf32> to vector<8x8xf32>
    %85 = arith.mulf %80, %84 : vector<8x8xf32>
    %86 = arith.truncf %85 : vector<8x8xf32> to vector<8x8xbf16>
    %cst_36 = arith.constant dense<0.000000e+00> : vector<8x128xf32>
    %87 = tpu.matmul %86, %72, %cst_36 {dimension_numbers = #tpu.dot_dimension_numbers<[1], [0], [0], [1], [0, 0, 1, 1], [], []>} : vector<8x8xbf16>, vector<8x128xbf16>, vector<8x128xf32> -> vector<8x128xf32>
    %88 = arith.addf %66, %87 : vector<8x128xf32>
    %89 = vector.broadcast %18 : vector<1x128xf32> to vector<8x128xf32>
    %90 = arith.mulf %63, %89 : vector<8x128xf32>
    %91 = arith.truncf %90 : vector<8x128xf32> to vector<8x128xbf16>
    %92 = vector.broadcast %18 : vector<1x128xf32> to vector<8x128xf32>
    %93 = arith.mulf %64, %92 : vector<8x128xf32>
    %94 = arith.truncf %93 : vector<8x128xf32> to vector<8x128xbf16>
    %cst_37 = arith.constant dense<0.000000e+00> : vector<8x8xf32>
    %95 = tpu.matmul %65, %91, %cst_37 {dimension_numbers = #tpu.dot_dimension_numbers<[1], [1], [0], [0], [0, 0, 1, 0], [], []>} : vector<8x128xbf16>, vector<8x128xbf16>, vector<8x8xf32> -> vector<8x8xf32>
    %cst_38 = arith.constant 0.353553385 : f32
    %96 = vector.broadcast %cst_38 : f32 to vector<8x8xf32>
    %97 = arith.mulf %95, %96 : vector<8x8xf32>
    %cst_39 = arith.constant dense<0xFF800000> : vector<8xf32>
    %98 = vector.multi_reduction <maximumf>, %97, %cst_39 [1] : vector<8x8xf32> to vector<8xf32>
    %99 = vector.shape_cast %98 : vector<8xf32> to vector<8x1xf32>
    %100 = vector.broadcast %99 : vector<8x1xf32> to vector<8x8xf32>
    %101 = arith.subf %97, %100 : vector<8x8xf32>
    %102 = math.exp %101 : vector<8x8xf32>
    %cst_40 = arith.constant dense<0.000000e+00> : vector<8xf32>
    %103 = vector.multi_reduction <add>, %102, %cst_40 [1] : vector<8x8xf32> to vector<8xf32>
    %104 = vector.shape_cast %103 : vector<8xf32> to vector<8x1xf32>
    %105 = tpu.reciprocal %104 {approx = true} : vector<8x1xf32> -> vector<8x1xf32>
    %106 = vector.broadcast %105 : vector<8x1xf32> to vector<8x8xf32>
    %107 = arith.mulf %102, %106 : vector<8x8xf32>
    %108 = arith.truncf %107 : vector<8x8xf32> to vector<8x8xbf16>
    %cst_41 = arith.constant dense<0.000000e+00> : vector<8x128xf32>
    %109 = tpu.matmul %108, %94, %cst_41 {dimension_numbers = #tpu.dot_dimension_numbers<[1], [0], [0], [1], [0, 0, 1, 1], [], []>} : vector<8x8xbf16>, vector<8x128xbf16>, vector<8x128xf32> -> vector<8x128xf32>
    %110 = arith.addf %88, %109 : vector<8x128xf32>
    %111 = vector.broadcast %25 : vector<1x128xf32> to vector<8x128xf32>
    %112 = arith.mulf %63, %111 : vector<8x128xf32>
    %113 = arith.truncf %112 : vector<8x128xf32> to vector<8x128xbf16>
    %114 = vector.broadcast %25 : vector<1x128xf32> to vector<8x128xf32>
    %115 = arith.mulf %64, %114 : vector<8x128xf32>
    %116 = arith.truncf %115 : vector<8x128xf32> to vector<8x128xbf16>
    %cst_42 = arith.constant dense<0.000000e+00> : vector<8x8xf32>
    %117 = tpu.matmul %65, %113, %cst_42 {dimension_numbers = #tpu.dot_dimension_numbers<[1], [1], [0], [0], [0, 0, 1, 0], [], []>} : vector<8x128xbf16>, vector<8x128xbf16>, vector<8x8xf32> -> vector<8x8xf32>
    %cst_43 = arith.constant 0.353553385 : f32
    %118 = vector.broadcast %cst_43 : f32 to vector<8x8xf32>
    %119 = arith.mulf %117, %118 : vector<8x8xf32>
    %cst_44 = arith.constant dense<0xFF800000> : vector<8xf32>
    %120 = vector.multi_reduction <maximumf>, %119, %cst_44 [1] : vector<8x8xf32> to vector<8xf32>
    %121 = vector.shape_cast %120 : vector<8xf32> to vector<8x1xf32>
    %122 = vector.broadcast %121 : vector<8x1xf32> to vector<8x8xf32>
    %123 = arith.subf %119, %122 : vector<8x8xf32>
    %124 = math.exp %123 : vector<8x8xf32>
    %cst_45 = arith.constant dense<0.000000e+00> : vector<8xf32>
    %125 = vector.multi_reduction <add>, %124, %cst_45 [1] : vector<8x8xf32> to vector<8xf32>
    %126 = vector.shape_cast %125 : vector<8xf32> to vector<8x1xf32>
    %127 = tpu.reciprocal %126 {approx = true} : vector<8x1xf32> -> vector<8x1xf32>
    %128 = vector.broadcast %127 : vector<8x1xf32> to vector<8x8xf32>
    %129 = arith.mulf %124, %128 : vector<8x8xf32>
    %130 = arith.truncf %129 : vector<8x8xf32> to vector<8x8xbf16>
    %cst_46 = arith.constant dense<0.000000e+00> : vector<8x128xf32>
    %131 = tpu.matmul %130, %116, %cst_46 {dimension_numbers = #tpu.dot_dimension_numbers<[1], [0], [0], [1], [0, 0, 1, 1], [], []>} : vector<8x8xbf16>, vector<8x128xbf16>, vector<8x128xf32> -> vector<8x128xf32>
    %132 = arith.addf %110, %131 : vector<8x128xf32>
    %133 = vector.broadcast %32 : vector<1x128xf32> to vector<8x128xf32>
    %134 = arith.mulf %63, %133 : vector<8x128xf32>
    %135 = arith.truncf %134 : vector<8x128xf32> to vector<8x128xbf16>
    %136 = vector.broadcast %32 : vector<1x128xf32> to vector<8x128xf32>
    %137 = arith.mulf %64, %136 : vector<8x128xf32>
    %138 = arith.truncf %137 : vector<8x128xf32> to vector<8x128xbf16>
    %cst_47 = arith.constant dense<0.000000e+00> : vector<8x8xf32>
    %139 = tpu.matmul %65, %135, %cst_47 {dimension_numbers = #tpu.dot_dimension_numbers<[1], [1], [0], [0], [0, 0, 1, 0], [], []>} : vector<8x128xbf16>, vector<8x128xbf16>, vector<8x8xf32> -> vector<8x8xf32>
    %cst_48 = arith.constant 0.353553385 : f32
    %140 = vector.broadcast %cst_48 : f32 to vector<8x8xf32>
    %141 = arith.mulf %139, %140 : vector<8x8xf32>
    %cst_49 = arith.constant dense<0xFF800000> : vector<8xf32>
    %142 = vector.multi_reduction <maximumf>, %141, %cst_49 [1] : vector<8x8xf32> to vector<8xf32>
    %143 = vector.shape_cast %142 : vector<8xf32> to vector<8x1xf32>
    %144 = vector.broadcast %143 : vector<8x1xf32> to vector<8x8xf32>
    %145 = arith.subf %141, %144 : vector<8x8xf32>
    %146 = math.exp %145 : vector<8x8xf32>
    %cst_50 = arith.constant dense<0.000000e+00> : vector<8xf32>
    %147 = vector.multi_reduction <add>, %146, %cst_50 [1] : vector<8x8xf32> to vector<8xf32>
    %148 = vector.shape_cast %147 : vector<8xf32> to vector<8x1xf32>
    %149 = tpu.reciprocal %148 {approx = true} : vector<8x1xf32> -> vector<8x1xf32>
    %150 = vector.broadcast %149 : vector<8x1xf32> to vector<8x8xf32>
    %151 = arith.mulf %146, %150 : vector<8x8xf32>
    %152 = arith.truncf %151 : vector<8x8xf32> to vector<8x8xbf16>
    %cst_51 = arith.constant dense<0.000000e+00> : vector<8x128xf32>
    %153 = tpu.matmul %152, %138, %cst_51 {dimension_numbers = #tpu.dot_dimension_numbers<[1], [0], [0], [1], [0, 0, 1, 1], [], []>} : vector<8x8xbf16>, vector<8x128xbf16>, vector<8x128xf32> -> vector<8x128xf32>
    %154 = arith.addf %132, %153 : vector<8x128xf32>
    %155 = arith.truncf %154 : vector<8x128xf32> to vector<8x128xbf16>
    %cst_52 = arith.constant dense<0.000000e+00> : vector<8x128xf32>
    %156 = tpu.matmul %155, %37, %cst_52 {dimension_numbers = #tpu.dot_dimension_numbers<[1], [0], [0], [1], [0, 0, 1, 1], [], []>} : vector<8x128xbf16>, vector<128x128xbf16>, vector<8x128xf32> -> vector<8x128xf32>
    %157 = vector.broadcast %45 : vector<1x128xf32> to vector<8x128xf32>
    %158 = arith.addf %156, %157 : vector<8x128xf32>
    %159 = arith.addf %158, %33 : vector<8x128xf32>
    %cst_53 = arith.constant dense<0.000000e+00> : vector<8xf32>
    %160 = vector.multi_reduction <add>, %159, %cst_53 [1] : vector<8x128xf32> to vector<8xf32>
    %161 = vector.shape_cast %160 : vector<8xf32> to vector<8x1xf32>
    %cst_54 = arith.constant 3.125000e-02 : f32
    %162 = vector.broadcast %cst_54 : f32 to vector<8x1xf32>
    %163 = arith.mulf %161, %162 : vector<8x1xf32>
    %164 = vector.broadcast %163 : vector<8x1xf32> to vector<8x128xf32>
    %165 = arith.subf %159, %164 : vector<8x128xf32>
    %166 = vector.broadcast %4 : vector<1x128xf32> to vector<8x128xf32>
    %167 = arith.mulf %165, %166 : vector<8x128xf32>
    %168 = arith.mulf %167, %167 : vector<8x128xf32>
    %cst_55 = arith.constant dense<0.000000e+00> : vector<8xf32>
    %169 = vector.multi_reduction <add>, %168, %cst_55 [1] : vector<8x128xf32> to vector<8xf32>
    %170 = vector.shape_cast %169 : vector<8xf32> to vector<8x1xf32>
    %cst_56 = arith.constant 3.125000e-02 : f32
    %171 = vector.broadcast %cst_56 : f32 to vector<8x1xf32>
    %172 = arith.mulf %170, %171 : vector<8x1xf32>
    %cst_57 = arith.constant 9.99999996E-13 : f32
    %173 = vector.broadcast %cst_57 : f32 to vector<8x1xf32>
    %174 = arith.addf %172, %173 : vector<8x1xf32>
    %175 = math.rsqrt %174 : vector<8x1xf32>
    %176 = vector.broadcast %175 : vector<8x1xf32> to vector<8x128xf32>
    %177 = arith.mulf %167, %176 : vector<8x128xf32>
    %178 = vector.broadcast %47 : vector<1x128xf32> to vector<8x128xf32>
    %179 = arith.mulf %177, %178 : vector<8x128xf32>
    %180 = vector.broadcast %49 : vector<1x128xf32> to vector<8x128xf32>
    %181 = arith.addf %179, %180 : vector<8x128xf32>
    %182 = arith.truncf %181 : vector<8x128xf32> to vector<8x128xbf16>
    %cst_58 = arith.constant dense<0.000000e+00> : vector<8x128xf32>
    %183 = tpu.matmul %182, %39, %cst_58 {dimension_numbers = #tpu.dot_dimension_numbers<[1], [0], [0], [1], [0, 0, 1, 1], [], []>} : vector<8x128xbf16>, vector<128x128xbf16>, vector<8x128xf32> -> vector<8x128xf32>
    %184 = vector.broadcast %51 : vector<1x128xf32> to vector<8x128xf32>
    %185 = arith.addf %183, %184 : vector<8x128xf32>
    %cst_59 = arith.constant 5.000000e-01 : f32
    %186 = vector.broadcast %cst_59 : f32 to vector<8x128xf32>
    %187 = arith.mulf %186, %185 : vector<8x128xf32>
    %cst_60 = arith.constant 2.000000e+00 : f32
    %188 = math.sqrt %cst_60 : f32
    %cst_61 = arith.constant 1.000000e+00 : f32
    %189 = arith.divf %cst_61, %188 : f32
    %190 = vector.broadcast %189 : f32 to vector<8x128xf32>
    %191 = arith.mulf %185, %190 : vector<8x128xf32>
    %192 = math.erf %191 : vector<8x128xf32>
    %cst_62 = arith.constant 1.000000e+00 : f32
    %193 = vector.broadcast %cst_62 : f32 to vector<8x128xf32>
    %194 = arith.addf %193, %192 : vector<8x128xf32>
    %195 = arith.mulf %187, %194 : vector<8x128xf32>
    %196 = arith.truncf %195 : vector<8x128xf32> to vector<8x128xbf16>
    %cst_63 = arith.constant dense<0.000000e+00> : vector<8x128xf32>
    %197 = tpu.matmul %196, %41, %cst_63 {dimension_numbers = #tpu.dot_dimension_numbers<[1], [0], [0], [1], [0, 0, 1, 1], [], []>} : vector<8x128xbf16>, vector<128x128xbf16>, vector<8x128xf32> -> vector<8x128xf32>
    %198 = vector.broadcast %53 : vector<1x128xf32> to vector<8x128xf32>
    %199 = arith.addf %197, %198 : vector<8x128xf32>
    %200 = arith.addf %199, %181 : vector<8x128xf32>
    %cst_64 = arith.constant dense<0.000000e+00> : vector<8xf32>
    %201 = vector.multi_reduction <add>, %200, %cst_64 [1] : vector<8x128xf32> to vector<8xf32>
    %202 = vector.shape_cast %201 : vector<8xf32> to vector<8x1xf32>
    %cst_65 = arith.constant 3.125000e-02 : f32
    %203 = vector.broadcast %cst_65 : f32 to vector<8x1xf32>
    %204 = arith.mulf %202, %203 : vector<8x1xf32>
    %205 = vector.broadcast %204 : vector<8x1xf32> to vector<8x128xf32>
    %206 = arith.subf %200, %205 : vector<8x128xf32>
    %207 = vector.broadcast %4 : vector<1x128xf32> to vector<8x128xf32>
    %208 = arith.mulf %206, %207 : vector<8x128xf32>
    %209 = arith.mulf %208, %208 : vector<8x128xf32>
    %cst_66 = arith.constant dense<0.000000e+00> : vector<8xf32>
    %210 = vector.multi_reduction <add>, %209, %cst_66 [1] : vector<8x128xf32> to vector<8xf32>
    %211 = vector.shape_cast %210 : vector<8xf32> to vector<8x1xf32>
    %cst_67 = arith.constant 3.125000e-02 : f32
    %212 = vector.broadcast %cst_67 : f32 to vector<8x1xf32>
    %213 = arith.mulf %211, %212 : vector<8x1xf32>
    %cst_68 = arith.constant 9.99999996E-13 : f32
    %214 = vector.broadcast %cst_68 : f32 to vector<8x1xf32>
    %215 = arith.addf %213, %214 : vector<8x1xf32>
    %216 = math.rsqrt %215 : vector<8x1xf32>
    %217 = vector.broadcast %216 : vector<8x1xf32> to vector<8x128xf32>
    %218 = arith.mulf %208, %217 : vector<8x128xf32>
    %219 = vector.broadcast %55 : vector<1x128xf32> to vector<8x128xf32>
    %220 = arith.mulf %218, %219 : vector<8x128xf32>
    %221 = vector.broadcast %57 : vector<1x128xf32> to vector<8x128xf32>
    %222 = arith.addf %220, %221 : vector<8x128xf32>
    %c1_69 = arith.constant 1 : index
    %c0_70 = arith.constant 0 : index
    %c0_71 = arith.constant 0 : index
    %223 = vector.load %arg2[%c1_69, %c0_70, %c0_71] : memref<2x128x768xbf16, #tpu.memory_space<vmem>>, vector<1x128x384xbf16>
    %224 = vector.shape_cast %223 : vector<1x128x384xbf16> to vector<128x384xbf16>
    %c1_72 = arith.constant 1 : index
    %c0_73 = arith.constant 0 : index
    %c384_74 = arith.constant 384 : index
    %225 = vector.load %arg2[%c1_72, %c0_73, %c384_74] : memref<2x128x768xbf16, #tpu.memory_space<vmem>>, vector<1x128x128xbf16>
    %226 = vector.shape_cast %225 : vector<1x128x128xbf16> to vector<128x128xbf16>
    %c1_75 = arith.constant 1 : index
    %c0_76 = arith.constant 0 : index
    %c512_77 = arith.constant 512 : index
    %227 = vector.load %arg2[%c1_75, %c0_76, %c512_77] : memref<2x128x768xbf16, #tpu.memory_space<vmem>>, vector<1x128x128xbf16>
    %228 = vector.shape_cast %227 : vector<1x128x128xbf16> to vector<128x128xbf16>
    %c1_78 = arith.constant 1 : index
    %c0_79 = arith.constant 0 : index
    %c640_80 = arith.constant 640 : index
    %229 = vector.load %arg2[%c1_78, %c0_79, %c640_80] : memref<2x128x768xbf16, #tpu.memory_space<vmem>>, vector<1x128x128xbf16>
    %230 = vector.shape_cast %229 : vector<1x128x128xbf16> to vector<128x128xbf16>
    %c1_81 = arith.constant 1 : index
    %c0_82 = arith.constant 0 : index
    %c0_83 = arith.constant 0 : index
    %231 = vector.load %arg3[%c1_81, %c0_82, %c0_83] : memref<2x8x384xf32, #tpu.memory_space<vmem>>, vector<1x1x384xf32>
    %232 = vector.shape_cast %231 : vector<1x1x384xf32> to vector<1x384xf32>
    %c1_84 = arith.constant 1 : index
    %c1_85 = arith.constant 1 : index
    %c0_86 = arith.constant 0 : index
    %233 = vector.load %arg3[%c1_84, %c1_85, %c0_86] : memref<2x8x384xf32, #tpu.memory_space<vmem>>, vector<1x1x128xf32>
    %234 = vector.shape_cast %233 : vector<1x1x128xf32> to vector<1x128xf32>
    %c1_87 = arith.constant 1 : index
    %c2_88 = arith.constant 2 : index
    %c0_89 = arith.constant 0 : index
    %235 = vector.load %arg3[%c1_87, %c2_88, %c0_89] : memref<2x8x384xf32, #tpu.memory_space<vmem>>, vector<1x1x128xf32>
    %236 = vector.shape_cast %235 : vector<1x1x128xf32> to vector<1x128xf32>
    %c1_90 = arith.constant 1 : index
    %c3_91 = arith.constant 3 : index
    %c0_92 = arith.constant 0 : index
    %237 = vector.load %arg3[%c1_90, %c3_91, %c0_92] : memref<2x8x384xf32, #tpu.memory_space<vmem>>, vector<1x1x128xf32>
    %238 = vector.shape_cast %237 : vector<1x1x128xf32> to vector<1x128xf32>
    %c1_93 = arith.constant 1 : index
    %c4_94 = arith.constant 4 : index
    %c0_95 = arith.constant 0 : index
    %239 = vector.load %arg3[%c1_93, %c4_94, %c0_95] : memref<2x8x384xf32, #tpu.memory_space<vmem>>, vector<1x1x128xf32>
    %240 = vector.shape_cast %239 : vector<1x1x128xf32> to vector<1x128xf32>
    %c1_96 = arith.constant 1 : index
    %c5_97 = arith.constant 5 : index
    %c0_98 = arith.constant 0 : index
    %241 = vector.load %arg3[%c1_96, %c5_97, %c0_98] : memref<2x8x384xf32, #tpu.memory_space<vmem>>, vector<1x1x128xf32>
    %242 = vector.shape_cast %241 : vector<1x1x128xf32> to vector<1x128xf32>
    %c1_99 = arith.constant 1 : index
    %c6_100 = arith.constant 6 : index
    %c0_101 = arith.constant 0 : index
    %243 = vector.load %arg3[%c1_99, %c6_100, %c0_101] : memref<2x8x384xf32, #tpu.memory_space<vmem>>, vector<1x1x128xf32>
    %244 = vector.shape_cast %243 : vector<1x1x128xf32> to vector<1x128xf32>
    %c1_102 = arith.constant 1 : index
    %c7_103 = arith.constant 7 : index
    %c0_104 = arith.constant 0 : index
    %245 = vector.load %arg3[%c1_102, %c7_103, %c0_104] : memref<2x8x384xf32, #tpu.memory_space<vmem>>, vector<1x1x128xf32>
    %246 = vector.shape_cast %245 : vector<1x1x128xf32> to vector<1x128xf32>
    %247 = arith.truncf %222 : vector<8x128xf32> to vector<8x128xbf16>
    %cst_105 = arith.constant dense<0.000000e+00> : vector<8x384xf32>
    %248 = tpu.matmul %247, %224, %cst_105 {dimension_numbers = #tpu.dot_dimension_numbers<[1], [0], [0], [1], [0, 0, 1, 1], [], []>} : vector<8x128xbf16>, vector<128x384xbf16>, vector<8x384xf32> -> vector<8x384xf32>
    %249 = vector.broadcast %232 : vector<1x384xf32> to vector<8x384xf32>
    %250 = arith.addf %248, %249 : vector<8x384xf32>
    %251 = vector.extract_strided_slice %250 {offsets = [0, 0], sizes = [8, 128], strides = [1, 1]} : vector<8x384xf32> to vector<8x128xf32>
    %252 = vector.extract_strided_slice %250 {offsets = [0, 128], sizes = [8, 128], strides = [1, 1]} : vector<8x384xf32> to vector<8x128xf32>
    %253 = vector.extract_strided_slice %250 {offsets = [0, 256], sizes = [8, 128], strides = [1, 1]} : vector<8x384xf32> to vector<8x128xf32>
    %254 = arith.truncf %251 : vector<8x128xf32> to vector<8x128xbf16>
    %cst_106 = arith.constant 0.000000e+00 : f32
    %255 = vector.broadcast %cst_106 : f32 to vector<8x128xf32>
    %256 = vector.broadcast %11 : vector<1x128xf32> to vector<8x128xf32>
    %257 = arith.mulf %252, %256 : vector<8x128xf32>
    %258 = arith.truncf %257 : vector<8x128xf32> to vector<8x128xbf16>
    %259 = vector.broadcast %11 : vector<1x128xf32> to vector<8x128xf32>
    %260 = arith.mulf %253, %259 : vector<8x128xf32>
    %261 = arith.truncf %260 : vector<8x128xf32> to vector<8x128xbf16>
    %cst_107 = arith.constant dense<0.000000e+00> : vector<8x8xf32>
    %262 = tpu.matmul %254, %258, %cst_107 {dimension_numbers = #tpu.dot_dimension_numbers<[1], [1], [0], [0], [0, 0, 1, 0], [], []>} : vector<8x128xbf16>, vector<8x128xbf16>, vector<8x8xf32> -> vector<8x8xf32>
    %cst_108 = arith.constant 0.353553385 : f32
    %263 = vector.broadcast %cst_108 : f32 to vector<8x8xf32>
    %264 = arith.mulf %262, %263 : vector<8x8xf32>
    %cst_109 = arith.constant dense<0xFF800000> : vector<8xf32>
    %265 = vector.multi_reduction <maximumf>, %264, %cst_109 [1] : vector<8x8xf32> to vector<8xf32>
    %266 = vector.shape_cast %265 : vector<8xf32> to vector<8x1xf32>
    %267 = vector.broadcast %266 : vector<8x1xf32> to vector<8x8xf32>
    %268 = arith.subf %264, %267 : vector<8x8xf32>
    %269 = math.exp %268 : vector<8x8xf32>
    %cst_110 = arith.constant dense<0.000000e+00> : vector<8xf32>
    %270 = vector.multi_reduction <add>, %269, %cst_110 [1] : vector<8x8xf32> to vector<8xf32>
    %271 = vector.shape_cast %270 : vector<8xf32> to vector<8x1xf32>
    %272 = tpu.reciprocal %271 {approx = true} : vector<8x1xf32> -> vector<8x1xf32>
    %273 = vector.broadcast %272 : vector<8x1xf32> to vector<8x8xf32>
    %274 = arith.mulf %269, %273 : vector<8x8xf32>
    %275 = arith.truncf %274 : vector<8x8xf32> to vector<8x8xbf16>
    %cst_111 = arith.constant dense<0.000000e+00> : vector<8x128xf32>
    %276 = tpu.matmul %275, %261, %cst_111 {dimension_numbers = #tpu.dot_dimension_numbers<[1], [0], [0], [1], [0, 0, 1, 1], [], []>} : vector<8x8xbf16>, vector<8x128xbf16>, vector<8x128xf32> -> vector<8x128xf32>
    %277 = arith.addf %255, %276 : vector<8x128xf32>
    %278 = vector.broadcast %18 : vector<1x128xf32> to vector<8x128xf32>
    %279 = arith.mulf %252, %278 : vector<8x128xf32>
    %280 = arith.truncf %279 : vector<8x128xf32> to vector<8x128xbf16>
    %281 = vector.broadcast %18 : vector<1x128xf32> to vector<8x128xf32>
    %282 = arith.mulf %253, %281 : vector<8x128xf32>
    %283 = arith.truncf %282 : vector<8x128xf32> to vector<8x128xbf16>
    %cst_112 = arith.constant dense<0.000000e+00> : vector<8x8xf32>
    %284 = tpu.matmul %254, %280, %cst_112 {dimension_numbers = #tpu.dot_dimension_numbers<[1], [1], [0], [0], [0, 0, 1, 0], [], []>} : vector<8x128xbf16>, vector<8x128xbf16>, vector<8x8xf32> -> vector<8x8xf32>
    %cst_113 = arith.constant 0.353553385 : f32
    %285 = vector.broadcast %cst_113 : f32 to vector<8x8xf32>
    %286 = arith.mulf %284, %285 : vector<8x8xf32>
    %cst_114 = arith.constant dense<0xFF800000> : vector<8xf32>
    %287 = vector.multi_reduction <maximumf>, %286, %cst_114 [1] : vector<8x8xf32> to vector<8xf32>
    %288 = vector.shape_cast %287 : vector<8xf32> to vector<8x1xf32>
    %289 = vector.broadcast %288 : vector<8x1xf32> to vector<8x8xf32>
    %290 = arith.subf %286, %289 : vector<8x8xf32>
    %291 = math.exp %290 : vector<8x8xf32>
    %cst_115 = arith.constant dense<0.000000e+00> : vector<8xf32>
    %292 = vector.multi_reduction <add>, %291, %cst_115 [1] : vector<8x8xf32> to vector<8xf32>
    %293 = vector.shape_cast %292 : vector<8xf32> to vector<8x1xf32>
    %294 = tpu.reciprocal %293 {approx = true} : vector<8x1xf32> -> vector<8x1xf32>
    %295 = vector.broadcast %294 : vector<8x1xf32> to vector<8x8xf32>
    %296 = arith.mulf %291, %295 : vector<8x8xf32>
    %297 = arith.truncf %296 : vector<8x8xf32> to vector<8x8xbf16>
    %cst_116 = arith.constant dense<0.000000e+00> : vector<8x128xf32>
    %298 = tpu.matmul %297, %283, %cst_116 {dimension_numbers = #tpu.dot_dimension_numbers<[1], [0], [0], [1], [0, 0, 1, 1], [], []>} : vector<8x8xbf16>, vector<8x128xbf16>, vector<8x128xf32> -> vector<8x128xf32>
    %299 = arith.addf %277, %298 : vector<8x128xf32>
    %300 = vector.broadcast %25 : vector<1x128xf32> to vector<8x128xf32>
    %301 = arith.mulf %252, %300 : vector<8x128xf32>
    %302 = arith.truncf %301 : vector<8x128xf32> to vector<8x128xbf16>
    %303 = vector.broadcast %25 : vector<1x128xf32> to vector<8x128xf32>
    %304 = arith.mulf %253, %303 : vector<8x128xf32>
    %305 = arith.truncf %304 : vector<8x128xf32> to vector<8x128xbf16>
    %cst_117 = arith.constant dense<0.000000e+00> : vector<8x8xf32>
    %306 = tpu.matmul %254, %302, %cst_117 {dimension_numbers = #tpu.dot_dimension_numbers<[1], [1], [0], [0], [0, 0, 1, 0], [], []>} : vector<8x128xbf16>, vector<8x128xbf16>, vector<8x8xf32> -> vector<8x8xf32>
    %cst_118 = arith.constant 0.353553385 : f32
    %307 = vector.broadcast %cst_118 : f32 to vector<8x8xf32>
    %308 = arith.mulf %306, %307 : vector<8x8xf32>
    %cst_119 = arith.constant dense<0xFF800000> : vector<8xf32>
    %309 = vector.multi_reduction <maximumf>, %308, %cst_119 [1] : vector<8x8xf32> to vector<8xf32>
    %310 = vector.shape_cast %309 : vector<8xf32> to vector<8x1xf32>
    %311 = vector.broadcast %310 : vector<8x1xf32> to vector<8x8xf32>
    %312 = arith.subf %308, %311 : vector<8x8xf32>
    %313 = math.exp %312 : vector<8x8xf32>
    %cst_120 = arith.constant dense<0.000000e+00> : vector<8xf32>
    %314 = vector.multi_reduction <add>, %313, %cst_120 [1] : vector<8x8xf32> to vector<8xf32>
    %315 = vector.shape_cast %314 : vector<8xf32> to vector<8x1xf32>
    %316 = tpu.reciprocal %315 {approx = true} : vector<8x1xf32> -> vector<8x1xf32>
    %317 = vector.broadcast %316 : vector<8x1xf32> to vector<8x8xf32>
    %318 = arith.mulf %313, %317 : vector<8x8xf32>
    %319 = arith.truncf %318 : vector<8x8xf32> to vector<8x8xbf16>
    %cst_121 = arith.constant dense<0.000000e+00> : vector<8x128xf32>
    %320 = tpu.matmul %319, %305, %cst_121 {dimension_numbers = #tpu.dot_dimension_numbers<[1], [0], [0], [1], [0, 0, 1, 1], [], []>} : vector<8x8xbf16>, vector<8x128xbf16>, vector<8x128xf32> -> vector<8x128xf32>
    %321 = arith.addf %299, %320 : vector<8x128xf32>
    %322 = vector.broadcast %32 : vector<1x128xf32> to vector<8x128xf32>
    %323 = arith.mulf %252, %322 : vector<8x128xf32>
    %324 = arith.truncf %323 : vector<8x128xf32> to vector<8x128xbf16>
    %325 = vector.broadcast %32 : vector<1x128xf32> to vector<8x128xf32>
    %326 = arith.mulf %253, %325 : vector<8x128xf32>
    %327 = arith.truncf %326 : vector<8x128xf32> to vector<8x128xbf16>
    %cst_122 = arith.constant dense<0.000000e+00> : vector<8x8xf32>
    %328 = tpu.matmul %254, %324, %cst_122 {dimension_numbers = #tpu.dot_dimension_numbers<[1], [1], [0], [0], [0, 0, 1, 0], [], []>} : vector<8x128xbf16>, vector<8x128xbf16>, vector<8x8xf32> -> vector<8x8xf32>
    %cst_123 = arith.constant 0.353553385 : f32
    %329 = vector.broadcast %cst_123 : f32 to vector<8x8xf32>
    %330 = arith.mulf %328, %329 : vector<8x8xf32>
    %cst_124 = arith.constant dense<0xFF800000> : vector<8xf32>
    %331 = vector.multi_reduction <maximumf>, %330, %cst_124 [1] : vector<8x8xf32> to vector<8xf32>
    %332 = vector.shape_cast %331 : vector<8xf32> to vector<8x1xf32>
    %333 = vector.broadcast %332 : vector<8x1xf32> to vector<8x8xf32>
    %334 = arith.subf %330, %333 : vector<8x8xf32>
    %335 = math.exp %334 : vector<8x8xf32>
    %cst_125 = arith.constant dense<0.000000e+00> : vector<8xf32>
    %336 = vector.multi_reduction <add>, %335, %cst_125 [1] : vector<8x8xf32> to vector<8xf32>
    %337 = vector.shape_cast %336 : vector<8xf32> to vector<8x1xf32>
    %338 = tpu.reciprocal %337 {approx = true} : vector<8x1xf32> -> vector<8x1xf32>
    %339 = vector.broadcast %338 : vector<8x1xf32> to vector<8x8xf32>
    %340 = arith.mulf %335, %339 : vector<8x8xf32>
    %341 = arith.truncf %340 : vector<8x8xf32> to vector<8x8xbf16>
    %cst_126 = arith.constant dense<0.000000e+00> : vector<8x128xf32>
    %342 = tpu.matmul %341, %327, %cst_126 {dimension_numbers = #tpu.dot_dimension_numbers<[1], [0], [0], [1], [0, 0, 1, 1], [], []>} : vector<8x8xbf16>, vector<8x128xbf16>, vector<8x128xf32> -> vector<8x128xf32>
    %343 = arith.addf %321, %342 : vector<8x128xf32>
    %344 = arith.truncf %343 : vector<8x128xf32> to vector<8x128xbf16>
    %cst_127 = arith.constant dense<0.000000e+00> : vector<8x128xf32>
    %345 = tpu.matmul %344, %226, %cst_127 {dimension_numbers = #tpu.dot_dimension_numbers<[1], [0], [0], [1], [0, 0, 1, 1], [], []>} : vector<8x128xbf16>, vector<128x128xbf16>, vector<8x128xf32> -> vector<8x128xf32>
    %346 = vector.broadcast %234 : vector<1x128xf32> to vector<8x128xf32>
    %347 = arith.addf %345, %346 : vector<8x128xf32>
    %348 = arith.addf %347, %222 : vector<8x128xf32>
    %cst_128 = arith.constant dense<0.000000e+00> : vector<8xf32>
    %349 = vector.multi_reduction <add>, %348, %cst_128 [1] : vector<8x128xf32> to vector<8xf32>
    %350 = vector.shape_cast %349 : vector<8xf32> to vector<8x1xf32>
    %cst_129 = arith.constant 3.125000e-02 : f32
    %351 = vector.broadcast %cst_129 : f32 to vector<8x1xf32>
    %352 = arith.mulf %350, %351 : vector<8x1xf32>
    %353 = vector.broadcast %352 : vector<8x1xf32> to vector<8x128xf32>
    %354 = arith.subf %348, %353 : vector<8x128xf32>
    %355 = vector.broadcast %4 : vector<1x128xf32> to vector<8x128xf32>
    %356 = arith.mulf %354, %355 : vector<8x128xf32>
    %357 = arith.mulf %356, %356 : vector<8x128xf32>
    %cst_130 = arith.constant dense<0.000000e+00> : vector<8xf32>
    %358 = vector.multi_reduction <add>, %357, %cst_130 [1] : vector<8x128xf32> to vector<8xf32>
    %359 = vector.shape_cast %358 : vector<8xf32> to vector<8x1xf32>
    %cst_131 = arith.constant 3.125000e-02 : f32
    %360 = vector.broadcast %cst_131 : f32 to vector<8x1xf32>
    %361 = arith.mulf %359, %360 : vector<8x1xf32>
    %cst_132 = arith.constant 9.99999996E-13 : f32
    %362 = vector.broadcast %cst_132 : f32 to vector<8x1xf32>
    %363 = arith.addf %361, %362 : vector<8x1xf32>
    %364 = math.rsqrt %363 : vector<8x1xf32>
    %365 = vector.broadcast %364 : vector<8x1xf32> to vector<8x128xf32>
    %366 = arith.mulf %356, %365 : vector<8x128xf32>
    %367 = vector.broadcast %236 : vector<1x128xf32> to vector<8x128xf32>
    %368 = arith.mulf %366, %367 : vector<8x128xf32>
    %369 = vector.broadcast %238 : vector<1x128xf32> to vector<8x128xf32>
    %370 = arith.addf %368, %369 : vector<8x128xf32>
    %371 = arith.truncf %370 : vector<8x128xf32> to vector<8x128xbf16>
    %cst_133 = arith.constant dense<0.000000e+00> : vector<8x128xf32>
    %372 = tpu.matmul %371, %228, %cst_133 {dimension_numbers = #tpu.dot_dimension_numbers<[1], [0], [0], [1], [0, 0, 1, 1], [], []>} : vector<8x128xbf16>, vector<128x128xbf16>, vector<8x128xf32> -> vector<8x128xf32>
    %373 = vector.broadcast %240 : vector<1x128xf32> to vector<8x128xf32>
    %374 = arith.addf %372, %373 : vector<8x128xf32>
    %cst_134 = arith.constant 5.000000e-01 : f32
    %375 = vector.broadcast %cst_134 : f32 to vector<8x128xf32>
    %376 = arith.mulf %375, %374 : vector<8x128xf32>
    %cst_135 = arith.constant 2.000000e+00 : f32
    %377 = math.sqrt %cst_135 : f32
    %cst_136 = arith.constant 1.000000e+00 : f32
    %378 = arith.divf %cst_136, %377 : f32
    %379 = vector.broadcast %378 : f32 to vector<8x128xf32>
    %380 = arith.mulf %374, %379 : vector<8x128xf32>
    %381 = math.erf %380 : vector<8x128xf32>
    %cst_137 = arith.constant 1.000000e+00 : f32
    %382 = vector.broadcast %cst_137 : f32 to vector<8x128xf32>
    %383 = arith.addf %382, %381 : vector<8x128xf32>
    %384 = arith.mulf %376, %383 : vector<8x128xf32>
    %385 = arith.truncf %384 : vector<8x128xf32> to vector<8x128xbf16>
    %cst_138 = arith.constant dense<0.000000e+00> : vector<8x128xf32>
    %386 = tpu.matmul %385, %230, %cst_138 {dimension_numbers = #tpu.dot_dimension_numbers<[1], [0], [0], [1], [0, 0, 1, 1], [], []>} : vector<8x128xbf16>, vector<128x128xbf16>, vector<8x128xf32> -> vector<8x128xf32>
    %387 = vector.broadcast %242 : vector<1x128xf32> to vector<8x128xf32>
    %388 = arith.addf %386, %387 : vector<8x128xf32>
    %389 = arith.addf %388, %370 : vector<8x128xf32>
    %cst_139 = arith.constant dense<0.000000e+00> : vector<8xf32>
    %390 = vector.multi_reduction <add>, %389, %cst_139 [1] : vector<8x128xf32> to vector<8xf32>
    %391 = vector.shape_cast %390 : vector<8xf32> to vector<8x1xf32>
    %cst_140 = arith.constant 3.125000e-02 : f32
    %392 = vector.broadcast %cst_140 : f32 to vector<8x1xf32>
    %393 = arith.mulf %391, %392 : vector<8x1xf32>
    %394 = vector.broadcast %393 : vector<8x1xf32> to vector<8x128xf32>
    %395 = arith.subf %389, %394 : vector<8x128xf32>
    %396 = vector.broadcast %4 : vector<1x128xf32> to vector<8x128xf32>
    %397 = arith.mulf %395, %396 : vector<8x128xf32>
    %398 = arith.mulf %397, %397 : vector<8x128xf32>
    %cst_141 = arith.constant dense<0.000000e+00> : vector<8xf32>
    %399 = vector.multi_reduction <add>, %398, %cst_141 [1] : vector<8x128xf32> to vector<8xf32>
    %400 = vector.shape_cast %399 : vector<8xf32> to vector<8x1xf32>
    %cst_142 = arith.constant 3.125000e-02 : f32
    %401 = vector.broadcast %cst_142 : f32 to vector<8x1xf32>
    %402 = arith.mulf %400, %401 : vector<8x1xf32>
    %cst_143 = arith.constant 9.99999996E-13 : f32
    %403 = vector.broadcast %cst_143 : f32 to vector<8x1xf32>
    %404 = arith.addf %402, %403 : vector<8x1xf32>
    %405 = math.rsqrt %404 : vector<8x1xf32>
    %406 = vector.broadcast %405 : vector<8x1xf32> to vector<8x128xf32>
    %407 = arith.mulf %397, %406 : vector<8x128xf32>
    %408 = vector.broadcast %244 : vector<1x128xf32> to vector<8x128xf32>
    %409 = arith.mulf %407, %408 : vector<8x128xf32>
    %410 = vector.broadcast %246 : vector<1x128xf32> to vector<8x128xf32>
    %411 = arith.addf %409, %410 : vector<8x128xf32>
    %c0_144 = arith.constant 0 : index
    %c0_145 = arith.constant 0 : index
    %412 = vector.load %arg4[%c0_144, %c0_145] : memref<8x128xf32, #tpu.memory_space<vmem>>, vector<8x128xf32>
    tpu.vector_store %arg4[%c0_144, %c0_145], %411 {strides = array<i32>} : memref<8x128xf32, #tpu.memory_space<vmem>>, vector<8x128xf32>,
    return
  }
  func.func @transform_0(%arg0: i32) -> (i32, i32) {
    %c0_i32 = arith.constant 0 : i32
    %c0_i32_0 = arith.constant 0 : i32
    %c0_i32_1 = arith.constant 0 : i32
    return %c0_i32, %c0_i32_0 : i32, i32
  }
  func.func @transform_1(%arg0: i32) -> (i32, i32, i32) {
    %c0_i32 = arith.constant 0 : i32
    %c0_i32_0 = arith.constant 0 : i32
    %c0_i32_1 = arith.constant 0 : i32
    %c0_i32_2 = arith.constant 0 : i32
    return %c0_i32, %c0_i32_0, %c0_i32_1 : i32, i32, i32
  }
  func.func @transform_2(%arg0: i32) -> (i32, i32, i32) {
    %c0_i32 = arith.constant 0 : i32
    %c0_i32_0 = arith.constant 0 : i32
    %c0_i32_1 = arith.constant 0 : i32
    %c0_i32_2 = arith.constant 0 : i32
    return %c0_i32, %c0_i32_0, %c0_i32_1 : i32, i32, i32
  }
  func.func @transform_3(%arg0: i32) -> (i32, i32) {
    %c0_i32 = arith.constant 0 : i32
    %c0_i32_0 = arith.constant 0 : i32
    %c0_i32_1 = arith.constant 0 : i32
    return %c0_i32, %c0_i32_0 : i32, i32
  }
}

</mosaic_0001>

<llo_original>
// kernel: tpu_custom_call.1
$region0: #{tpu_custom_call.1}
  #allocation0 [shape = 'u32[]', space=smem, size = 0x4, offset = 0x4, fixed_abs, tag = 'smem constant byte address 0x4 - core index']
  #allocation1 [shape = 'u32[72,128]{1,0:T(1,128)}', space=vmem, size = 0x9000, scoped, tag = 'internal scratch']
  %s0 = inlined_call_operand.hbm [shape: f32[8,128], index: 0, kind: input, shape index: {}]
  %s1 = inlined_call_operand.hbm [shape: bf16[2,128,768], index: 1, kind: input, shape index: {}]
  %s2 = inlined_call_operand.hbm [shape: f32[2,8,384], index: 2, kind: input, shape index: {}]
  %s3 = inlined_call_operand.hbm [shape: f32[8,128], index: 3, kind: output, shape index: {}]
  %s4 = sld [smem:[#allocation0]]
  $region34: #{tpu_custom_call.1} parent=0
    _
  %s6 = ssub.s32 1, %s4
  %s7 = scalar_select 0, %s6, %s4
  $region1: #{tpu_custom_call.1} parent=0
    #allocation2 [shape = 'u8[4096]{0}', space=vmem, size = 0x1000, scoped, tag = 'input window, operand 0, single buffered']
    #allocation3 [shape = 's32[1]{0}', space=sflag, size = 0x4, scoped, tag = 'scoped memory for tpu_custom_call.1']
    #allocation4 [shape = 's32[1]{0}', space=sflag, size = 0x4, scoped, tag = 'scoped memory for tpu_custom_call.1']
    #allocation5 [shape = 'u8[393216]{0}', space=vmem, size = 0x60000, scoped, tag = 'input window, operand 1, single buffered']
    #allocation6 [shape = 's32[1]{0}', space=sflag, size = 0x4, scoped, tag = 'scoped memory for tpu_custom_call.1']
    #allocation7 [shape = 'u8[24576]{0}', space=vmem, size = 0x6000, scoped, tag = 'input window, operand 2, single buffered']
    #allocation8 [shape = 'u8[4096]{0}', space=vmem, size = 0x1000, scoped, tag = 'output window, operand 0, single buffered']
    %8 = vsyncpa [#allocation3], 0
    %9 = vsyncpa [#allocation6], 0
    %10 = vsyncpa [#allocation4], 0
    // Predicated region
    $region2: #{tpu_custom_call.1} parent=1 // pred_check
      _
    $region3: #{tpu_custom_call.1} parent=1 // pred_check_branch
      %12 = sbr.rel (0) target = $region5
    $region4: #{tpu_custom_call.1} parent=1 // pred_region
      %14 = vsyncadd [#allocation3], 0
      %s16 = sshll.u32 %s0, 4
      %s17 = int_to_ptr.hbm [resolvable:$true] %s16
      %s18 = sshll.u32 [#allocation2], 4
      %s19 = int_to_ptr.vmem [resolvable:$true] %s18
      %21 = dma.hbm_to_vmem [thread:$0]  %s17, 128, %s19, [#allocation3]
    $region5: #{tpu_custom_call.1} parent=1 // pred_fallthru
      _
    // Predicated region
    $region6: #{tpu_custom_call.1} parent=1 // pred_check
      _
    $region7: #{tpu_custom_call.1} parent=1 // pred_check_branch
      %23 = sbr.rel (0) target = $region9
    $region8: #{tpu_custom_call.1} parent=1 // pred_region
      %25 = vsyncadd [#allocation6], 0
      %s26 = sshll.u32 %s1, 4
      %s27 = int_to_ptr.hbm [resolvable:$true] %s26
      %s28 = sshll.u32 [#allocation5], 4
      %s29 = int_to_ptr.vmem [resolvable:$true] %s28
      %34 = dma.hbm_to_vmem [thread:$0]  %s27, 12288, %s29, [#allocation6], 384, 384, 24
    $region9: #{tpu_custom_call.1} parent=1 // pred_fallthru
      _
    // Predicated region
    $region10: #{tpu_custom_call.1} parent=1 // pred_check
      _
    $region11: #{tpu_custom_call.1} parent=1 // pred_check_branch
      %36 = sbr.rel (0) target = $region13
    $region12: #{tpu_custom_call.1} parent=1 // pred_region
      %38 = vsyncadd [#allocation6], 0
      %s39 = sshll.u32 %s2, 4
      %s40 = int_to_ptr.hbm [resolvable:$true] %s39
      %s41 = sshll.u32 [#allocation7], 4
      %s42 = int_to_ptr.vmem [resolvable:$true] %s41
      %47 = dma.hbm_to_vmem [thread:$0]  %s40, 768, %s42, [#allocation6], 384, 384, 24
    $region13: #{tpu_custom_call.1} parent=1 // pred_fallthru
      _
    // Predicated region
    $region14: #{tpu_custom_call.1} parent=1 // pred_check
      _
    $region15: #{tpu_custom_call.1} parent=1 // pred_check_branch
      %49 = sbr.rel (0) target = $region17
    $region16: #{tpu_custom_call.1} parent=1 // pred_region
      %51 = dma.done [#allocation3], 128
    $region17: #{tpu_custom_call.1} parent=1 // pred_fallthru
      _
    // Predicated region
    $region18: #{tpu_custom_call.1} parent=1 // pred_check
      _
    $region19: #{tpu_custom_call.1} parent=1 // pred_check_branch
      %53 = sbr.rel (0) target = $region21
    $region20: #{tpu_custom_call.1} parent=1 // pred_region
      %55 = dma.done [#allocation6], 12288
    $region21: #{tpu_custom_call.1} parent=1 // pred_fallthru
      _
    // Predicated region
    $region22: #{tpu_custom_call.1} parent=1 // pred_check
      _
    $region23: #{tpu_custom_call.1} parent=1 // pred_check_branch
      %57 = sbr.rel (0) target = $region25
    $region24: #{tpu_custom_call.1} parent=1 // pred_region
      %59 = dma.done [#allocation6], 768
    $region25: #{tpu_custom_call.1} parent=1 // pred_fallthru
      _
    %v61 = vlaneseq
    %v62 = vand.u32 %v61, 127
    %vm63 = vcmp.lt.s32.totalorder %v62, 32
    %v64 = vsel %vm63, 1, 0
    %v65 = vcvt.s32.f32 %v64
    %vm66 = vcmp.ge.s32.totalorder %v62, 0
    %vm67 = vcmp.lt.s32.totalorder %v62, 8
    %vm68 = vmand %vm66, %vm67
    %v69 = vsel %vm68, 1, 0
    %v70 = vcvt.s32.f32 %v69
    %vm71 = vcmp.ge.s32.totalorder %v62, 8
    %vm72 = vcmp.lt.s32.totalorder %v62, 16
    %vm73 = vmand %vm71, %vm72
    %v74 = vsel %vm73, 1, 0
    %v75 = vcvt.s32.f32 %v74
    %vm76 = vcmp.ge.s32.totalorder %v62, 16
    %vm77 = vcmp.lt.s32.totalorder %v62, 24
    %vm78 = vmand %vm76, %vm77
    %v79 = vsel %vm78, 1, 0
    %v80 = vcvt.s32.f32 %v79
    %vm81 = vcmp.ge.s32.totalorder %v62, 24
    %vm82 = vmand %vm81, %vm63
    %v83 = vsel %vm82, 1, 0
    %v84 = vcvt.s32.f32 %v83
    %v85 = vld [vmem:[#allocation2] sm:$0xff]
    %v86 = vld [vmem:[#allocation5] sm:$0xff]
    %v87 = vld [vmem:[#allocation5 + $0x8] sm:$0xf]
    %v88 = vld [vmem:[#allocation5 + $0x18] sm:$0xff]
    %v89 = vld [vmem:[#allocation5 + $0x20] sm:$0xf]
    %v90 = vld [vmem:[#allocation5 + $0x30] sm:$0xff]
    %v91 = vld [vmem:[#allocation5 + $0x38] sm:$0xf]
    %v92 = vld [vmem:[#allocation5 + $0x48] sm:$0xff]
    %v93 = vld [vmem:[#allocation5 + $0x50] sm:$0xf]
    %v94 = vld [vmem:[#allocation5 + $0x60] sm:$0xff]
    %v95 = vld [vmem:[#allocation5 + $0x68] sm:$0xf]
    %v96 = vld [vmem:[#allocation5 + $0x78] sm:$0xff]
    %v97 = vld [vmem:[#allocation5 + $0x80] sm:$0xf]
    %v98 = vld [vmem:[#allocation5 + $0x90] sm:$0xff]
    %v99 = vld [vmem:[#allocation5 + $0x98] sm:$0xf]
    %v100 = vld [vmem:[#allocation5 + $0xa8] sm:$0xff]
    %v101 = vld [vmem:[#allocation5 + $0xb0] sm:$0xf]
    %v102 = vld [vmem:[#allocation5 + $0xc0] sm:$0xff]
    %v103 = vld [vmem:[#allocation5 + $0xc8] sm:$0xf]
    %v104 = vld [vmem:[#allocation5 + $0xd8] sm:$0xff]
    %v105 = vld [vmem:[#allocation5 + $0xe0] sm:$0xf]
    %v106 = vld [vmem:[#allocation5 + $0xf0] sm:$0xff]
    %v107 = vld [vmem:[#allocation5 + $0xf8] sm:$0xf]
    %v108 = vld [vmem:[#allocation5 + $0x108] sm:$0xff]
    %v109 = vld [vmem:[#allocation5 + $0x110] sm:$0xf]
    %v110 = vld [vmem:[#allocation5 + $0x120] sm:$0xff]
    %v111 = vld [vmem:[#allocation5 + $0x128] sm:$0xf]
    %v112 = vld [vmem:[#allocation5 + $0x138] sm:$0xff]
    %v113 = vld [vmem:[#allocation5 + $0x140] sm:$0xf]
    %v114 = vld [vmem:[#allocation5 + $0x150] sm:$0xff]
    %v115 = vld [vmem:[#allocation5 + $0x158] sm:$0xf]
    %v116 = vld [vmem:[#allocation5 + $0x168] sm:$0xff]
    %v117 = vld [vmem:[#allocation5 + $0x170] sm:$0xf]
    %v118 = vld [vmem:[#allocation5 + $0xc] sm:$0xf]
    %v119 = vld [vmem:[#allocation5 + $0x24] sm:$0xf]
    %v120 = vld [vmem:[#allocation5 + $0x3c] sm:$0xf]
    %v121 = vld [vmem:[#allocation5 + $0x54] sm:$0xf]
    %v122 = vld [vmem:[#allocation5 + $0x6c] sm:$0xf]
    %v123 = vld [vmem:[#allocation5 + $0x84] sm:$0xf]
    %v124 = vld [vmem:[#allocation5 + $0x9c] sm:$0xf]
    %v125 = vld [vmem:[#allocation5 + $0xb4] sm:$0xf]
    %v126 = vld [vmem:[#allocation5 + $0xcc] sm:$0xf]
    %v127 = vld [vmem:[#allocation5 + $0xe4] sm:$0xf]
    %v128 = vld [vmem:[#allocation5 + $0xfc] sm:$0xf]
    %v129 = vld [vmem:[#allocation5 + $0x114] sm:$0xf]
    %v130 = vld [vmem:[#allocation5 + $0x12c] sm:$0xf]
    %v131 = vld [vmem:[#allocation5 + $0x144] sm:$0xf]
    %v132 = vld [vmem:[#allocation5 + $0x15c] sm:$0xf]
    %v133 = vld [vmem:[#allocation5 + $0x174] sm:$0xf]
    %v134 = vld [vmem:[#allocation5 + $0x10] sm:$0xf]
    %v135 = vld [vmem:[#allocation5 + $0x28] sm:$0xf]
    %v136 = vld [vmem:[#allocation5 + $0x40] sm:$0xf]
    %v137 = vld [vmem:[#allocation5 + $0x58] sm:$0xf]
    %v138 = vld [vmem:[#allocation5 + $0x70] sm:$0xf]
    %v139 = vld [vmem:[#allocation5 + $0x88] sm:$0xf]
    %v140 = vld [vmem:[#allocation5 + $0xa0] sm:$0xf]
    %v141 = vld [vmem:[#allocation5 + $0xb8] sm:$0xf]
    %v142 = vld [vmem:[#allocation5 + $0xd0] sm:$0xf]
    %v143 = vld [vmem:[#allocation5 + $0xe8] sm:$0xf]
    %v144 = vld [vmem:[#allocation5 + $0x100] sm:$0xf]
    %v145 = vld [vmem:[#allocation5 + $0x118] sm:$0xf]
    %v146 = vld [vmem:[#allocation5 + $0x130] sm:$0xf]
    %v147 = vld [vmem:[#allocation5 + $0x148] sm:$0xf]
    %v148 = vld [vmem:[#allocation5 + $0x160] sm:$0xf]
    %v149 = vld [vmem:[#allocation5 + $0x178] sm:$0xf]
    %v150 = vld [vmem:[#allocation5 + $0x14] sm:$0xf]
    %v151 = vld [vmem:[#allocation5 + $0x2c] sm:$0xf]
    %v152 = vld [vmem:[#allocation5 + $0x44] sm:$0xf]
    %v153 = vld [vmem:[#allocation5 + $0x5c] sm:$0xf]
    %v154 = vld [vmem:[#allocation5 + $0x74] sm:$0xf]
    %v155 = vld [vmem:[#allocation5 + $0x8c] sm:$0xf]
    %v156 = vld [vmem:[#allocation5 + $0xa4] sm:$0xf]
    %v157 = vld [vmem:[#allocation5 + $0xbc] sm:$0xf]
    %v158 = vld [vmem:[#allocation5 + $0xd4] sm:$0xf]
    %v159 = vld [vmem:[#allocation5 + $0xec] sm:$0xf]
    %v160 = vld [vmem:[#allocation5 + $0x104] sm:$0xf]
    %v161 = vld [vmem:[#allocation5 + $0x11c] sm:$0xf]
    %v162 = vld [vmem:[#allocation5 + $0x134] sm:$0xf]
    %v163 = vld [vmem:[#allocation5 + $0x14c] sm:$0xf]
    %v164 = vld [vmem:[#allocation5 + $0x164] sm:$0xf]
    %v165 = vld [vmem:[#allocation5 + $0x17c] sm:$0xf]
    %v166 = vld [vmem:[#allocation7] ss:$8 sm:$0x7]
    %v167 = vld [vmem:[#allocation7 + $0x1] ss:$0 sm:$0xff]
    %v168 = vld [vmem:[#allocation7 + $0x2] ss:$0 sm:$0xff]
    %v169 = vld [vmem:[#allocation7 + $0x3] ss:$0 sm:$0xff]
    %v170 = vld [vmem:[#allocation7 + $0x4] ss:$0 sm:$0xff]
    %v171 = vld [vmem:[#allocation7 + $0x5] ss:$0 sm:$0xff]
    %v172 = vld [vmem:[#allocation7 + $0x6] ss:$0 sm:$0xff]
    %v173 = vld [vmem:[#allocation7 + $0x7] ss:$0 sm:$0xff]
    %v174 = vpack.c.bf16 %v85, %v85
    %v176 = vperm.slane %v166, 0
    %v177 = vperm.slane %v166, 1
    %v178 = vperm.slane %v166, 2
    %v214 = vunpack.c.l.b16 %v86
    %v215 = vunpack.c.h.b16 %v86
    %v216 = vunpack.c.l.b16 %v87
    %v217 = vunpack.c.l.b16 %v88
    %v218 = vunpack.c.h.b16 %v88
    %v219 = vunpack.c.l.b16 %v89
    %v220 = vunpack.c.l.b16 %v90
    %v221 = vunpack.c.h.b16 %v90
    %v222 = vunpack.c.l.b16 %v91
    %v223 = vunpack.c.l.b16 %v92
    %v224 = vunpack.c.h.b16 %v92
    %v225 = vunpack.c.l.b16 %v93
    %v226 = vunpack.c.l.b16 %v94
    %v227 = vunpack.c.h.b16 %v94
    %v228 = vunpack.c.l.b16 %v95
    %v229 = vunpack.c.l.b16 %v96
    %v230 = vunpack.c.h.b16 %v96
    %v231 = vunpack.c.l.b16 %v97
    %v232 = vunpack.c.l.b16 %v98
    %v233 = vunpack.c.h.b16 %v98
    %v234 = vunpack.c.l.b16 %v99
    %v235 = vunpack.c.l.b16 %v100
    %v236 = vunpack.c.h.b16 %v100
    %v237 = vunpack.c.l.b16 %v101
    %v238 = vunpack.c.l.b16 %v102
    %v239 = vunpack.c.h.b16 %v102
    %v240 = vunpack.c.l.b16 %v103
    %v241 = vunpack.c.l.b16 %v104
    %v242 = vunpack.c.h.b16 %v104
    %v243 = vunpack.c.l.b16 %v105
    %v244 = vunpack.c.l.b16 %v106
    %v245 = vunpack.c.h.b16 %v106
    %v246 = vunpack.c.l.b16 %v107
    %v247 = vunpack.c.l.b16 %v108
    %v248 = vunpack.c.h.b16 %v108
    %v249 = vunpack.c.l.b16 %v109
    %v250 = vunpack.c.l.b16 %v110
    %v251 = vunpack.c.h.b16 %v110
    %v252 = vunpack.c.l.b16 %v111
    %v253 = vunpack.c.l.b16 %v112
    %v254 = vunpack.c.h.b16 %v112
    %v255 = vunpack.c.l.b16 %v113
    %v256 = vunpack.c.l.b16 %v114
    %v257 = vunpack.c.h.b16 %v114
    %v258 = vunpack.c.l.b16 %v115
    %v259 = vunpack.c.l.b16 %v116
    %v260 = vunpack.c.h.b16 %v116
    %v261 = vunpack.c.l.b16 %v117
    %v262 = vpack.c.b16 %v217, %v214
    %v263 = vpack.c.b16 %v218, %v215
    %v264 = vpack.c.b16 %v219, %v216
    %v265 = vpack.c.b16 %v223, %v220
    %v266 = vpack.c.b16 %v224, %v221
    %v267 = vpack.c.b16 %v225, %v222
    %v268 = vpack.c.b16 %v229, %v226
    %v269 = vpack.c.b16 %v230, %v227
    %v270 = vpack.c.b16 %v231, %v228
    %v271 = vpack.c.b16 %v235, %v232
    %v272 = vpack.c.b16 %v236, %v233
    %v273 = vpack.c.b16 %v237, %v234
    %v274 = vpack.c.b16 %v241, %v238
    %v275 = vpack.c.b16 %v242, %v239
    %v276 = vpack.c.b16 %v243, %v240
    %v277 = vpack.c.b16 %v247, %v244
    %v278 = vpack.c.b16 %v248, %v245
    %v279 = vpack.c.b16 %v249, %v246
    %v280 = vpack.c.b16 %v253, %v250
    %v281 = vpack.c.b16 %v254, %v251
    %v282 = vpack.c.b16 %v255, %v252
    %v283 = vpack.c.b16 %v259, %v256
    %v284 = vpack.c.b16 %v260, %v257
    %v285 = vpack.c.b16 %v261, %v258
    %310 = vmatpush.bf16.msra.mxu0 %v283
    %311 = vmatpush.bf16.msra.mxu0 %v280
    %312 = vmatpush.bf16.msra.mxu0 %v277
    %313 = vmatpush.bf16.msra.mxu0 %v274
    %314 = vmatpush.bf16.msra.mxu0 %v271
    %315 = vmatpush.bf16.msra.mxu0 %v268
    %316 = vmatpush.bf16.msra.mxu0 %v265
    %317 = vmatpush.bf16.msra.mxu0 %v262
    %318 = vmatmul.bf16.gmra.mxu0 %v174
    %v319 = vpop.f32.mrf.mxu0
    %v320 = vadd.f32 %v176, %v319
    %v321 = vpop.f32.mrf.mxu0
    %322 = vdwg.mxu0
    %323 = vmatpush.bf16.msra.mxu0 %v284
    %324 = vmatpush.bf16.msra.mxu0 %v281
    %325 = vmatpush.bf16.msra.mxu0 %v278
    %326 = vmatpush.bf16.msra.mxu0 %v275
    %327 = vmatpush.bf16.msra.mxu0 %v272
    %328 = vmatpush.bf16.msra.mxu0 %v269
    %329 = vmatpush.bf16.msra.mxu0 %v266
    %330 = vmatpush.bf16.msra.mxu0 %v263
    %331 = vmatmul.bf16.gmra.mxu0 %v174
    %v332 = vpop.f32.mrf.mxu0
    %v333 = vadd.f32 %v177, %v332
    %v334 = vpop.f32.mrf.mxu0
    %335 = vdwg.mxu0
    %336 = vmatpush.bf16.msra.mxu0 %v285
    %337 = vmatpush.bf16.msra.mxu0 %v282
    %338 = vmatpush.bf16.msra.mxu0 %v279
    %339 = vmatpush.bf16.msra.mxu0 %v276
    %340 = vmatpush.bf16.msra.mxu0 %v273
    %341 = vmatpush.bf16.msra.mxu0 %v270
    %342 = vmatpush.bf16.msra.mxu0 %v267
    %343 = vmatpush.bf16.msra.mxu0 %v264
    %344 = vmatmul.bf16.gmra.mxu0 %v174
    %v345 = vpop.f32.mrf.mxu0
    %v346 = vadd.f32 %v178, %v345
    %v347 = vpop.f32.mrf.mxu0
    %348 = vdwg.mxu0
    %v349 = vpack.c.bf16 %v320, %v320
    %v350 = vmul.f32 %v333, %v70
    %v351 = vpack.c.bf16 %v350, %v350
    %v352 = vmul.f32 %v346, %v70
    %v353 = vpack.c.bf16 %v352, %v352
    %354 = vmatpush.bf16.xpose.msra.mxu0 0
    %355 = vmatpush.bf16.xpose.msra.mxu0 0
    %356 = vmatpush.bf16.xpose.msra.mxu0 0
    %357 = vmatpush.bf16.xpose.msra.mxu0 0
    %358 = vmatpush.bf16.xpose.msra.mxu0 0
    %359 = vmatpush.bf16.xpose.msra.mxu0 0
    %360 = vmatpush.bf16.xpose.msra.mxu0 0
    %361 = vmatpush.bf16.xpose.msra.mxu0 %v351
    %362 = vmatmul.bf16.gmra.mxu0 %v349
    %v363 = vpop.f32.mrf.mxu0
    %v364 = vadd.f32 0.0, %v363
    %v365 = vpop.f32.mrf.mxu0
    %366 = vdwg.mxu0
    %v367 = vmul.f32 %v364, 0.35355338
    %vm368 = vcmask 64512
    %v369 = vsel %vm368, %v367, -inf
    %370 = vmax.xlane.f32.xlu0 %v369
    %v371 = vpop.xlane.xlu0 %370
    %v372 = vsub.f32 %v367, %v371
    %v373 = vmul.f32 %v372, 1.442695
    %v374 = vpow.pop %v373
    %v375 = vsel %vm368, %v374, 0.0
    %376 = vadd.xlane.f32.xlu0 %v375
    %v377 = vpop.xlane.xlu0 %376
    %v378 = vrcp.pop %v377
    %v379 = vmul.f32 %v374, %v378
    %v380 = vpack.c.bf16 %v379, %v379
    %v381 = vmul.f32 %v333, %v75
    %v382 = vpack.c.bf16 %v381, %v381
    %v383 = vmul.f32 %v346, %v75
    %v384 = vpack.c.bf16 %v383, %v383
    %385 = vmatpush.bf16.xpose.msra.mxu0 0
    %386 = vmatpush.bf16.xpose.msra.mxu0 0
    %387 = vmatpush.bf16.xpose.msra.mxu0 0
    %388 = vmatpush.bf16.xpose.msra.mxu0 0
    %389 = vmatpush.bf16.xpose.msra.mxu0 0
    %390 = vmatpush.bf16.xpose.msra.mxu0 0
    %391 = vmatpush.bf16.xpose.msra.mxu0 0
    %392 = vmatpush.bf16.xpose.msra.mxu0 %v382
    %393 = vmatmul.bf16.gmra.mxu0 %v349
    %v394 = vpop.f32.mrf.mxu0
    %v395 = vadd.f32 0.0, %v394
    %v396 = vpop.f32.mrf.mxu0
    %397 = vdwg.mxu0
    %v398 = vmul.f32 %v395, 0.35355338
    %v399 = vsel %vm368, %v398, -inf
    %400 = vmax.xlane.f32.xlu0 %v399
    %v401 = vpop.xlane.xlu0 %400
    %v402 = vsub.f32 %v398, %v401
    %v403 = vmul.f32 %v402, 1.442695
    %v404 = vpow.pop %v403
    %v405 = vsel %vm368, %v404, 0.0
    %406 = vadd.xlane.f32.xlu0 %v405
    %v407 = vpop.xlane.xlu0 %406
    %v408 = vrcp.pop %v407
    %v409 = vmul.f32 %v404, %v408
    %v410 = vpack.c.bf16 %v409, %v409
    %v412 = vsel %vm368, %v410, 0
    %vm414 = vcmask 1043456
    %v416 = vsel %vm414, %v384, 0
    %418 = vmatpush.bf16.msra.mxu0 0
    %419 = vmatpush.bf16.msra.mxu0 0
    %420 = vmatpush.bf16.msra.mxu0 0
    %421 = vmatpush.bf16.msra.mxu0 0
    %422 = vmatpush.bf16.msra.mxu0 0
    %423 = vmatpush.bf16.msra.mxu0 0
    %424 = vmatpush.bf16.msra.mxu0 0
    %425 = vmatpush.bf16.msra.mxu0 %v416
    %426 = vmatmul.bf16.gmra.mxu0 %v412
    %v427 = vpop.f32.mrf.mxu0
    %v428 = vadd.f32 0.0, %v427
    %v429 = vpop.f32.mrf.mxu0
    %430 = vdwg.mxu0
    %v432 = vsel %vm368, %v380, 0
    %v435 = vsel %vm414, %v353, 0
    %437 = vmatpush.bf16.msra.mxu0 0
    %438 = vmatpush.bf16.msra.mxu0 0
    %439 = vmatpush.bf16.msra.mxu0 0
    %440 = vmatpush.bf16.msra.mxu0 0
    %441 = vmatpush.bf16.msra.mxu0 0
    %442 = vmatpush.bf16.msra.mxu0 0
    %443 = vmatpush.bf16.msra.mxu0 0
    %444 = vmatpush.bf16.msra.mxu0 %v435
    %445 = vmatmul.bf16.gmra.mxu0 %v432
    %v446 = vpop.f32.mrf.mxu0
    %v447 = vadd.f32 %v428, %v446
    %v448 = vpop.f32.mrf.mxu0
    %449 = vdwg.mxu0
    %v450 = vmul.f32 %v333, %v80
    %v451 = vpack.c.bf16 %v450, %v450
    %v452 = vmul.f32 %v346, %v80
    %v453 = vpack.c.bf16 %v452, %v452
    %454 = vmatpush.bf16.xpose.msra.mxu0 0
    %455 = vmatpush.bf16.xpose.msra.mxu0 0
    %456 = vmatpush.bf16.xpose.msra.mxu0 0
    %457 = vmatpush.bf16.xpose.msra.mxu0 0
    %458 = vmatpush.bf16.xpose.msra.mxu0 0
    %459 = vmatpush.bf16.xpose.msra.mxu0 0
    %460 = vmatpush.bf16.xpose.msra.mxu0 0
    %461 = vmatpush.bf16.xpose.msra.mxu0 %v451
    %462 = vmatmul.bf16.gmra.mxu0 %v349
    %v463 = vpop.f32.mrf.mxu0
    %v464 = vadd.f32 0.0, %v463
    %v465 = vpop.f32.mrf.mxu0
    %466 = vdwg.mxu0
    %v467 = vmul.f32 %v464, 0.35355338
    %v468 = vsel %vm368, %v467, -inf
    %469 = vmax.xlane.f32.xlu0 %v468
    %v470 = vpop.xlane.xlu0 %469
    %v471 = vsub.f32 %v467, %v470
    %v472 = vmul.f32 %v471, 1.442695
    %v473 = vpow.pop %v472
    %v474 = vsel %vm368, %v473, 0.0
    %475 = vadd.xlane.f32.xlu0 %v474
    %v476 = vpop.xlane.xlu0 %475
    %v477 = vrcp.pop %v476
    %v478 = vmul.f32 %v473, %v477
    %v479 = vpack.c.bf16 %v478, %v478
    %v481 = vsel %vm368, %v479, 0
    %v484 = vsel %vm414, %v453, 0
    %486 = vmatpush.bf16.msra.mxu0 0
    %487 = vmatpush.bf16.msra.mxu0 0
    %488 = vmatpush.bf16.msra.mxu0 0
    %489 = vmatpush.bf16.msra.mxu0 0
    %490 = vmatpush.bf16.msra.mxu0 0
    %491 = vmatpush.bf16.msra.mxu0 0
    %492 = vmatpush.bf16.msra.mxu0 0
    %493 = vmatpush.bf16.msra.mxu0 %v484
    %494 = vmatmul.bf16.gmra.mxu0 %v481
    %v495 = vpop.f32.mrf.mxu0
    %v496 = vadd.f32 0.0, %v495
    %v497 = vpop.f32.mrf.mxu0
    %498 = vdwg.mxu0
    %v499 = vadd.f32 %v447, %v496
    %v500 = vmul.f32 %v333, %v84
    %v501 = vpack.c.bf16 %v500, %v500
    %v502 = vmul.f32 %v346, %v84
    %v503 = vpack.c.bf16 %v502, %v502
    %504 = vmatpush.bf16.xpose.msra.mxu0 0
    %505 = vmatpush.bf16.xpose.msra.mxu0 0
    %506 = vmatpush.bf16.xpose.msra.mxu0 0
    %507 = vmatpush.bf16.xpose.msra.mxu0 0
    %508 = vmatpush.bf16.xpose.msra.mxu0 0
    %509 = vmatpush.bf16.xpose.msra.mxu0 0
    %510 = vmatpush.bf16.xpose.msra.mxu0 0
    %511 = vmatpush.bf16.xpose.msra.mxu0 %v501
    %512 = vmatmul.bf16.gmra.mxu0 %v349
    %v513 = vpop.f32.mrf.mxu0
    %v514 = vadd.f32 0.0, %v513
    %v515 = vpop.f32.mrf.mxu0
    %516 = vdwg.mxu0
    %v517 = vmul.f32 %v514, 0.35355338
    %v518 = vsel %vm368, %v517, -inf
    %519 = vmax.xlane.f32.xlu0 %v518
    %v520 = vpop.xlane.xlu0 %519
    %v521 = vsub.f32 %v517, %v520
    %v522 = vmul.f32 %v521, 1.442695
    %v523 = vpow.pop %v522
    %v524 = vsel %vm368, %v523, 0.0
    %525 = vadd.xlane.f32.xlu0 %v524
    %v526 = vpop.xlane.xlu0 %525
    %v527 = vrcp.pop %v526
    %v528 = vmul.f32 %v523, %v527
    %v529 = vpack.c.bf16 %v528, %v528
    %v531 = vsel %vm368, %v529, 0
    %v534 = vsel %vm414, %v503, 0
    %536 = vmatpush.bf16.msra.mxu0 0
    %537 = vmatpush.bf16.msra.mxu0 0
    %538 = vmatpush.bf16.msra.mxu0 0
    %539 = vmatpush.bf16.msra.mxu0 0
    %540 = vmatpush.bf16.msra.mxu0 0
    %541 = vmatpush.bf16.msra.mxu0 0
    %542 = vmatpush.bf16.msra.mxu0 0
    %543 = vmatpush.bf16.msra.mxu0 %v534
    %544 = vmatmul.bf16.gmra.mxu0 %v531
    %v545 = vpop.f32.mrf.mxu0
    %v546 = vadd.f32 0.0, %v545
    %v547 = vpop.f32.mrf.mxu0
    %548 = vdwg.mxu0
    %v549 = vadd.f32 %v499, %v546
    %v550 = vpack.c.bf16 %v549, %v549
    %v567 = vunpack.c.l.b16 %v118
    %v568 = vunpack.c.l.b16 %v119
    %v569 = vunpack.c.l.b16 %v120
    %v570 = vunpack.c.l.b16 %v121
    %v571 = vunpack.c.l.b16 %v122
    %v572 = vunpack.c.l.b16 %v123
    %v573 = vunpack.c.l.b16 %v124
    %v574 = vunpack.c.l.b16 %v125
    %v575 = vunpack.c.l.b16 %v126
    %v576 = vunpack.c.l.b16 %v127
    %v577 = vunpack.c.l.b16 %v128
    %v578 = vunpack.c.l.b16 %v129
    %v579 = vunpack.c.l.b16 %v130
    %v580 = vunpack.c.l.b16 %v131
    %v581 = vunpack.c.l.b16 %v132
    %v582 = vunpack.c.l.b16 %v133
    %v583 = vpack.c.b16 %v568, %v567
    %v584 = vpack.c.b16 %v570, %v569
    %v585 = vpack.c.b16 %v572, %v571
    %v586 = vpack.c.b16 %v574, %v573
    %v587 = vpack.c.b16 %v576, %v575
    %v588 = vpack.c.b16 %v578, %v577
    %v589 = vpack.c.b16 %v580, %v579
    %v590 = vpack.c.b16 %v582, %v581
    %599 = vmatpush.bf16.msra.mxu0 %v590
    %600 = vmatpush.bf16.msra.mxu0 %v589
    %601 = vmatpush.bf16.msra.mxu0 %v588
    %602 = vmatpush.bf16.msra.mxu0 %v587
    %603 = vmatpush.bf16.msra.mxu0 %v586
    %604 = vmatpush.bf16.msra.mxu0 %v585
    %605 = vmatpush.bf16.msra.mxu0 %v584
    %606 = vmatpush.bf16.msra.mxu0 %v583
    %607 = vmatmul.bf16.gmra.mxu0 %v550
    %v608 = vpop.f32.mrf.mxu0
    %v609 = vadd.f32 %v167, %v608
    %v610 = vpop.f32.mrf.mxu0
    %611 = vdwg.mxu0
    %v612 = vadd.f32 %v609, %v85
    %613 = vadd.xlane.f32.xlu0 %v612
    %v614 = vpop.xlane.xlu0 %613
    %v615 = vmul.f32 %v614, 0.03125
    %v616 = vsub.f32 %v612, %v615
    %v617 = vmul.f32 %v616, %v65
    %v618 = vmul.f32 %v617, %v617
    %619 = vadd.xlane.f32.xlu0 %v618
    %v620 = vpop.xlane.xlu0 %619
    %v621 = vmul.f32 %v620, 0.03125
    %v622 = vadd.f32 %v621, 1e-12
    %v623 = vrsqrt.pop %v622
    %v624 = vmul.f32 %v623, %v622
    %v625 = vmul.f32 %v624, %v623
    %v626 = vmul.f32 0.5, %v625
    %v627 = vsub.f32 1.5, %v626
    %v628 = vmul.f32 %v623, %v627
    %vm629 = vweird.f32 %v622
    %vm630 = vweird.f32 %v623
    %vm631 = vmor %vm629, %vm630
    %v632 = vsel %vm631, %v623, %v628
    %v633 = vmul.f32 %v617, %v632
    %v634 = vmul.f32 %v633, %v168
    %v635 = vadd.f32 %v634, %v169
    %v636 = vpack.c.bf16 %v635, %v635
    %v653 = vunpack.c.l.b16 %v134
    %v654 = vunpack.c.l.b16 %v135
    %v655 = vunpack.c.l.b16 %v136
    %v656 = vunpack.c.l.b16 %v137
    %v657 = vunpack.c.l.b16 %v138
    %v658 = vunpack.c.l.b16 %v139
    %v659 = vunpack.c.l.b16 %v140
    %v660 = vunpack.c.l.b16 %v141
    %v661 = vunpack.c.l.b16 %v142
    %v662 = vunpack.c.l.b16 %v143
    %v663 = vunpack.c.l.b16 %v144
    %v664 = vunpack.c.l.b16 %v145
    %v665 = vunpack.c.l.b16 %v146
    %v666 = vunpack.c.l.b16 %v147
    %v667 = vunpack.c.l.b16 %v148
    %v668 = vunpack.c.l.b16 %v149
    %v669 = vpack.c.b16 %v654, %v653
    %v670 = vpack.c.b16 %v656, %v655
    %v671 = vpack.c.b16 %v658, %v657
    %v672 = vpack.c.b16 %v660, %v659
    %v673 = vpack.c.b16 %v662, %v661
    %v674 = vpack.c.b16 %v664, %v663
    %v675 = vpack.c.b16 %v666, %v665
    %v676 = vpack.c.b16 %v668, %v667
    %685 = vmatpush.bf16.msra.mxu0 %v676
    %686 = vmatpush.bf16.msra.mxu0 %v675
    %687 = vmatpush.bf16.msra.mxu0 %v674
    %688 = vmatpush.bf16.msra.mxu0 %v673
    %689 = vmatpush.bf16.msra.mxu0 %v672
    %690 = vmatpush.bf16.msra.mxu0 %v671
    %691 = vmatpush.bf16.msra.mxu0 %v670
    %692 = vmatpush.bf16.msra.mxu0 %v669
    %693 = vmatmul.bf16.gmra.mxu0 %v636
    %v694 = vpop.f32.mrf.mxu0
    %v695 = vadd.f32 %v170, %v694
    %v696 = vpop.f32.mrf.mxu0
    %697 = vdwg.mxu0
    %v698 = vmul.f32 %v695, 0.5
    %v699 = vmul.f32 %v695, 0.70710677
    %v700 = vmul.f32 %v699, %v699
    %v701 = vmin.f32 16.0, %v700
    %v702 = vmul.f32 %v701, 2.1237322e-06
    %v703 = vadd.f32 %v702, 0.00028619796
    %v704 = vmul.f32 %v701, %v703
    %v705 = vadd.f32 %v704, 0.0036580483
    %v706 = vmul.f32 %v701, %v705
    %v707 = vadd.f32 %v706, 0.05243302
    %v708 = vmul.f32 %v701, %v707
    %v709 = vadd.f32 %v708, 0.18741608
    %v710 = vmul.f32 %v701, %v709
    %v711 = vadd.f32 %v710, 1.1283791
    %v712 = vmul.f32 %v699, %v711
    %v713 = vmul.f32 %v701, 3.8918573e-05
    %v714 = vadd.f32 %v713, 0.001143296
    %v715 = vmul.f32 %v701, %v714
    %v716 = vadd.f32 %v715, 0.014752088
    %v717 = vmul.f32 %v701, %v716
    %v718 = vadd.f32 %v717, 0.112945676
    %v719 = vmul.f32 %v701, %v718
    %v720 = vadd.f32 %v719, 0.4994258
    %v721 = vmul.f32 %v701, %v720
    %v722 = vadd.f32 %v721, 1.0
    %v723 = vrcp.pop %v722
    %v724 = vmul.f32 %v722, %v723
    %v725 = vsub.f32 1.0, %v724
    %v726 = vmul.f32 %v723, %v725
    %v727 = vadd.f32 %v723, %v726
    %vm728 = vweird.f32 %v722
    %vm729 = vweird.f32 %v723
    %vm730 = vmor %vm728, %vm729
    %v731 = vsel %vm730, %v723, %v727
    %v732 = vand.u32 2147483647, %v722
    %vm733 = vcmp.eq.f32.partialorder %v732, 8.507059e+37
    %v734 = vand.u32 %v722, 2147483648
    %v735 = vor.u32 1.1754944e-38, %v734
    %v736 = vsel %vm733, %v735, %v731
    %v737 = vmul.f32 %v712, %v736
    %v738 = vmin.f32 %v737, 1.0
    %v739 = vmax.f32 %v738, -1.0
    %v740 = vadd.f32 %v739, 1.0
    %v741 = vmul.f32 %v698, %v740
    %v742 = vpack.c.bf16 %v741, %v741
    %v759 = vunpack.c.l.b16 %v150
    %v760 = vunpack.c.l.b16 %v151
    %v761 = vunpack.c.l.b16 %v152
    %v762 = vunpack.c.l.b16 %v153
    %v763 = vunpack.c.l.b16 %v154
    %v764 = vunpack.c.l.b16 %v155
    %v765 = vunpack.c.l.b16 %v156
    %v766 = vunpack.c.l.b16 %v157
    %v767 = vunpack.c.l.b16 %v158
    %v768 = vunpack.c.l.b16 %v159
    %v769 = vunpack.c.l.b16 %v160
    %v770 = vunpack.c.l.b16 %v161
    %v771 = vunpack.c.l.b16 %v162
    %v772 = vunpack.c.l.b16 %v163
    %v773 = vunpack.c.l.b16 %v164
    %v774 = vunpack.c.l.b16 %v165
    %v775 = vpack.c.b16 %v760, %v759
    %v776 = vpack.c.b16 %v762, %v761
    %v777 = vpack.c.b16 %v764, %v763
    %v778 = vpack.c.b16 %v766, %v765
    %v779 = vpack.c.b16 %v768, %v767
    %v780 = vpack.c.b16 %v770, %v769
    %v781 = vpack.c.b16 %v772, %v771
    %v782 = vpack.c.b16 %v774, %v773
    %791 = vmatpush.bf16.msra.mxu0 %v782
    %792 = vmatpush.bf16.msra.mxu0 %v781
    %793 = vmatpush.bf16.msra.mxu0 %v780
    %794 = vmatpush.bf16.msra.mxu0 %v779
    %795 = vmatpush.bf16.msra.mxu0 %v778
    %796 = vmatpush.bf16.msra.mxu0 %v777
    %797 = vmatpush.bf16.msra.mxu0 %v776
    %798 = vmatpush.bf16.msra.mxu0 %v775
    %799 = vmatmul.bf16.gmra.mxu0 %v742
    %v800 = vpop.f32.mrf.mxu0
    %v801 = vadd.f32 %v171, %v800
    %v802 = vpop.f32.mrf.mxu0
    %803 = vdwg.mxu0
    %v804 = vadd.f32 %v801, %v635
    %805 = vadd.xlane.f32.xlu0 %v804
    %v806 = vpop.xlane.xlu0 %805
    %v807 = vmul.f32 %v806, 0.03125
    %v808 = vsub.f32 %v804, %v807
    %v809 = vmul.f32 %v808, %v65
    %v810 = vmul.f32 %v809, %v809
    %811 = vadd.xlane.f32.xlu0 %v810
    %v812 = vpop.xlane.xlu0 %811
    %v813 = vmul.f32 %v812, 0.03125
    %v814 = vadd.f32 %v813, 1e-12
    %v815 = vrsqrt.pop %v814
    %v816 = vmul.f32 %v815, %v814
    %v817 = vmul.f32 %v816, %v815
    %v818 = vmul.f32 0.5, %v817
    %v819 = vsub.f32 1.5, %v818
    %v820 = vmul.f32 %v815, %v819
    %vm821 = vweird.f32 %v814
    %vm822 = vweird.f32 %v815
    %vm823 = vmor %vm821, %vm822
    %v824 = vsel %vm823, %v815, %v820
    %v825 = vmul.f32 %v809, %v824
    %v826 = vmul.f32 %v825, %v172
    %v827 = vadd.f32 %v826, %v173
    %s828 = scalar_lea.vmem [#allocation5], 384
    %v829 = vld [vmem:[%s828] sm:$0xff]
    %v830 = vld [vmem:[%s828 + $0x8] sm:$0xf]
    %v831 = vld [vmem:[%s828 + $0x18] sm:$0xff]
    %v832 = vld [vmem:[%s828 + $0x20] sm:$0xf]
    %v833 = vld [vmem:[%s828 + $0x30] sm:$0xff]
    %v834 = vld [vmem:[%s828 + $0x38] sm:$0xf]
    %v835 = vld [vmem:[%s828 + $0x48] sm:$0xff]
    %v836 = vld [vmem:[%s828 + $0x50] sm:$0xf]
    %v837 = vld [vmem:[%s828 + $0x60] sm:$0xff]
    %v838 = vld [vmem:[%s828 + $0x68] sm:$0xf]
    %v839 = vld [vmem:[%s828 + $0x78] sm:$0xff]
    %v840 = vld [vmem:[%s828 + $0x80] sm:$0xf]
    %v841 = vld [vmem:[%s828 + $0x90] sm:$0xff]
    %v842 = vld [vmem:[%s828 + $0x98] sm:$0xf]
    %v843 = vld [vmem:[%s828 + $0xa8] sm:$0xff]
    %v844 = vld [vmem:[%s828 + $0xb0] sm:$0xf]
    %v845 = vld [vmem:[%s828 + $0xc0] sm:$0xff]
    %v846 = vld [vmem:[%s828 + $0xc8] sm:$0xf]
    %v847 = vld [vmem:[%s828 + $0xd8] sm:$0xff]
    %v848 = vld [vmem:[%s828 + $0xe0] sm:$0xf]
    %v849 = vld [vmem:[%s828 + $0xf0] sm:$0xff]
    %v850 = vld [vmem:[%s828 + $0xf8] sm:$0xf]
    %v851 = vld [vmem:[%s828 + $0x108] sm:$0xff]
    %v852 = vld [vmem:[%s828 + $0x110] sm:$0xf]
    %v853 = vld [vmem:[%s828 + $0x120] sm:$0xff]
    %v854 = vld [vmem:[%s828 + $0x128] sm:$0xf]
    %v855 = vld [vmem:[%s828 + $0x138] sm:$0xff]
    %v856 = vld [vmem:[%s828 + $0x140] sm:$0xf]
    %v857 = vld [vmem:[%s828 + $0x150] sm:$0xff]
    %v858 = vld [vmem:[%s828 + $0x158] sm:$0xf]
    %v859 = vld [vmem:[%s828 + $0x168] sm:$0xff]
    %v860 = vld [vmem:[%s828 + $0x170] sm:$0xf]
    %v861 = vld [vmem:[%s828 + $0xc] sm:$0xf]
    %v862 = vld [vmem:[%s828 + $0x24] sm:$0xf]
    %v863 = vld [vmem:[%s828 + $0x3c] sm:$0xf]
    %v864 = vld [vmem:[%s828 + $0x54] sm:$0xf]
    %v865 = vld [vmem:[%s828 + $0x6c] sm:$0xf]
    %v866 = vld [vmem:[%s828 + $0x84] sm:$0xf]
    %v867 = vld [vmem:[%s828 + $0x9c] sm:$0xf]
    %v868 = vld [vmem:[%s828 + $0xb4] sm:$0xf]
    %v869 = vld [vmem:[%s828 + $0xcc] sm:$0xf]
    %v870 = vld [vmem:[%s828 + $0xe4] sm:$0xf]
    %v871 = vld [vmem:[%s828 + $0xfc] sm:$0xf]
    %v872 = vld [vmem:[%s828 + $0x114] sm:$0xf]
    %v873 = vld [vmem:[%s828 + $0x12c] sm:$0xf]
    %v874 = vld [vmem:[%s828 + $0x144] sm:$0xf]
    %v875 = vld [vmem:[%s828 + $0x15c] sm:$0xf]
    %v876 = vld [vmem:[%s828 + $0x174] sm:$0xf]
    %v877 = vld [vmem:[%s828 + $0x10] sm:$0xf]
    %v878 = vld [vmem:[%s828 + $0x28] sm:$0xf]
    %v879 = vld [vmem:[%s828 + $0x40] sm:$0xf]
    %v880 = vld [vmem:[%s828 + $0x58] sm:$0xf]
    %v881 = vld [vmem:[%s828 + $0x70] sm:$0xf]
    %v882 = vld [vmem:[%s828 + $0x88] sm:$0xf]
    %v883 = vld [vmem:[%s828 + $0xa0] sm:$0xf]
    %v884 = vld [vmem:[%s828 + $0xb8] sm:$0xf]
    %v885 = vld [vmem:[%s828 + $0xd0] sm:$0xf]
    %v886 = vld [vmem:[%s828 + $0xe8] sm:$0xf]
    %v887 = vld [vmem:[%s828 + $0x100] sm:$0xf]
    %v888 = vld [vmem:[%s828 + $0x118] sm:$0xf]
    %v889 = vld [vmem:[%s828 + $0x130] sm:$0xf]
    %v890 = vld [vmem:[%s828 + $0x148] sm:$0xf]
    %v891 = vld [vmem:[%s828 + $0x160] sm:$0xf]
    %v892 = vld [vmem:[%s828 + $0x178] sm:$0xf]
    %v893 = vld [vmem:[%s828 + $0x14] sm:$0xf]
    %v894 = vld [vmem:[%s828 + $0x2c] sm:$0xf]
    %v895 = vld [vmem:[%s828 + $0x44] sm:$0xf]
    %v896 = vld [vmem:[%s828 + $0x5c] sm:$0xf]
    %v897 = vld [vmem:[%s828 + $0x74] sm:$0xf]
    %v898 = vld [vmem:[%s828 + $0x8c] sm:$0xf]
    %v899 = vld [vmem:[%s828 + $0xa4] sm:$0xf]
    %v900 = vld [vmem:[%s828 + $0xbc] sm:$0xf]
    %v901 = vld [vmem:[%s828 + $0xd4] sm:$0xf]
    %v902 = vld [vmem:[%s828 + $0xec] sm:$0xf]
    %v903 = vld [vmem:[%s828 + $0x104] sm:$0xf]
    %v904 = vld [vmem:[%s828 + $0x11c] sm:$0xf]
    %v905 = vld [vmem:[%s828 + $0x134] sm:$0xf]
    %v906 = vld [vmem:[%s828 + $0x14c] sm:$0xf]
    %v907 = vld [vmem:[%s828 + $0x164] sm:$0xf]
    %v908 = vld [vmem:[%s828 + $0x17c] sm:$0xf]
    %s909 = scalar_lea.vmem [#allocation7], 24
    %v910 = vld [vmem:[%s909] ss:$8 sm:$0x7]
    %v911 = vld [vmem:[%s909 + $0x1] ss:$0 sm:$0xff]
    %v912 = vld [vmem:[%s909 + $0x2] ss:$0 sm:$0xff]
    %v913 = vld [vmem:[%s909 + $0x3] ss:$0 sm:$0xff]
    %v914 = vld [vmem:[%s909 + $0x4] ss:$0 sm:$0xff]
    %v915 = vld [vmem:[%s909 + $0x5] ss:$0 sm:$0xff]
    %v916 = vld [vmem:[%s909 + $0x6] ss:$0 sm:$0xff]
    %v917 = vld [vmem:[%s909 + $0x7] ss:$0 sm:$0xff]
    %v918 = vpack.c.bf16 %v827, %v827
    %v920 = vperm.slane %v910, 0
    %v921 = vperm.slane %v910, 1
    %v922 = vperm.slane %v910, 2
    %v958 = vunpack.c.l.b16 %v829
    %v959 = vunpack.c.h.b16 %v829
    %v960 = vunpack.c.l.b16 %v830
    %v961 = vunpack.c.l.b16 %v831
    %v962 = vunpack.c.h.b16 %v831
    %v963 = vunpack.c.l.b16 %v832
    %v964 = vunpack.c.l.b16 %v833
    %v965 = vunpack.c.h.b16 %v833
    %v966 = vunpack.c.l.b16 %v834
    %v967 = vunpack.c.l.b16 %v835
    %v968 = vunpack.c.h.b16 %v835
    %v969 = vunpack.c.l.b16 %v836
    %v970 = vunpack.c.l.b16 %v837
    %v971 = vunpack.c.h.b16 %v837
    %v972 = vunpack.c.l.b16 %v838
    %v973 = vunpack.c.l.b16 %v839
    %v974 = vunpack.c.h.b16 %v839
    %v975 = vunpack.c.l.b16 %v840
    %v976 = vunpack.c.l.b16 %v841
    %v977 = vunpack.c.h.b16 %v841
    %v978 = vunpack.c.l.b16 %v842
    %v979 = vunpack.c.l.b16 %v843
    %v980 = vunpack.c.h.b16 %v843
    %v981 = vunpack.c.l.b16 %v844
    %v982 = vunpack.c.l.b16 %v845
    %v983 = vunpack.c.h.b16 %v845
    %v984 = vunpack.c.l.b16 %v846
    %v985 = vunpack.c.l.b16 %v847
    %v986 = vunpack.c.h.b16 %v847
    %v987 = vunpack.c.l.b16 %v848
    %v988 = vunpack.c.l.b16 %v849
    %v989 = vunpack.c.h.b16 %v849
    %v990 = vunpack.c.l.b16 %v850
    %v991 = vunpack.c.l.b16 %v851
    %v992 = vunpack.c.h.b16 %v851
    %v993 = vunpack.c.l.b16 %v852
    %v994 = vunpack.c.l.b16 %v853
    %v995 = vunpack.c.h.b16 %v853
    %v996 = vunpack.c.l.b16 %v854
    %v997 = vunpack.c.l.b16 %v855
    %v998 = vunpack.c.h.b16 %v855
    %v999 = vunpack.c.l.b16 %v856
    %v1000 = vunpack.c.l.b16 %v857
    %v1001 = vunpack.c.h.b16 %v857
    %v1002 = vunpack.c.l.b16 %v858
    %v1003 = vunpack.c.l.b16 %v859
    %v1004 = vunpack.c.h.b16 %v859
    %v1005 = vunpack.c.l.b16 %v860
    %v1006 = vpack.c.b16 %v961, %v958
    %v1007 = vpack.c.b16 %v962, %v959
    %v1008 = vpack.c.b16 %v963, %v960
    %v1009 = vpack.c.b16 %v967, %v964
    %v1010 = vpack.c.b16 %v968, %v965
    %v1011 = vpack.c.b16 %v969, %v966
    %v1012 = vpack.c.b16 %v973, %v970
    %v1013 = vpack.c.b16 %v974, %v971
    %v1014 = vpack.c.b16 %v975, %v972
    %v1015 = vpack.c.b16 %v979, %v976
    %v1016 = vpack.c.b16 %v980, %v977
    %v1017 = vpack.c.b16 %v981, %v978
    %v1018 = vpack.c.b16 %v985, %v982
    %v1019 = vpack.c.b16 %v986, %v983
    %v1020 = vpack.c.b16 %v987, %v984
    %v1021 = vpack.c.b16 %v991, %v988
    %v1022 = vpack.c.b16 %v992, %v989
    %v1023 = vpack.c.b16 %v993, %v990
    %v1024 = vpack.c.b16 %v997, %v994
    %v1025 = vpack.c.b16 %v998, %v995
    %v1026 = vpack.c.b16 %v999, %v996
    %v1027 = vpack.c.b16 %v1003, %v1000
    %v1028 = vpack.c.b16 %v1004, %v1001
    %v1029 = vpack.c.b16 %v1005, %v1002
    %1054 = vmatpush.bf16.msra.mxu0 %v1027
    %1055 = vmatpush.bf16.msra.mxu0 %v1024
    %1056 = vmatpush.bf16.msra.mxu0 %v1021
    %1057 = vmatpush.bf16.msra.mxu0 %v1018
    %1058 = vmatpush.bf16.msra.mxu0 %v1015
    %1059 = vmatpush.bf16.msra.mxu0 %v1012
    %1060 = vmatpush.bf16.msra.mxu0 %v1009
    %1061 = vmatpush.bf16.msra.mxu0 %v1006
    %1062 = vmatmul.bf16.gmra.mxu0 %v918
    %v1063 = vpop.f32.mrf.mxu0
    %v1064 = vadd.f32 %v920, %v1063
    %v1065 = vpop.f32.mrf.mxu0
    %1066 = vdwg.mxu0
    %1067 = vmatpush.bf16.msra.mxu0 %v1028
    %1068 = vmatpush.bf16.msra.mxu0 %v1025
    %1069 = vmatpush.bf16.msra.mxu0 %v1022
    %1070 = vmatpush.bf16.msra.mxu0 %v1019
    %1071 = vmatpush.bf16.msra.mxu0 %v1016
    %1072 = vmatpush.bf16.msra.mxu0 %v1013
    %1073 = vmatpush.bf16.msra.mxu0 %v1010
    %1074 = vmatpush.bf16.msra.mxu0 %v1007
    %1075 = vmatmul.bf16.gmra.mxu0 %v918
    %v1076 = vpop.f32.mrf.mxu0
    %v1077 = vadd.f32 %v921, %v1076
    %v1078 = vpop.f32.mrf.mxu0
    %1079 = vdwg.mxu0
    %1080 = vmatpush.bf16.msra.mxu0 %v1029
    %1081 = vmatpush.bf16.msra.mxu0 %v1026
    %1082 = vmatpush.bf16.msra.mxu0 %v1023
    %1083 = vmatpush.bf16.msra.mxu0 %v1020
    %1084 = vmatpush.bf16.msra.mxu0 %v1017
    %1085 = vmatpush.bf16.msra.mxu0 %v1014
    %1086 = vmatpush.bf16.msra.mxu0 %v1011
    %1087 = vmatpush.bf16.msra.mxu0 %v1008
    %1088 = vmatmul.bf16.gmra.mxu0 %v918
    %v1089 = vpop.f32.mrf.mxu0
    %v1090 = vadd.f32 %v922, %v1089
    %v1091 = vpop.f32.mrf.mxu0
    %1092 = vdwg.mxu0
    %v1093 = vpack.c.bf16 %v1064, %v1064
    %v1094 = vmul.f32 %v1077, %v70
    %v1095 = vpack.c.bf16 %v1094, %v1094
    %v1096 = vmul.f32 %v1090, %v70
    %v1097 = vpack.c.bf16 %v1096, %v1096
    %1098 = vmatpush.bf16.xpose.msra.mxu0 0
    %1099 = vmatpush.bf16.xpose.msra.mxu0 0
    %1100 = vmatpush.bf16.xpose.msra.mxu0 0
    %1101 = vmatpush.bf16.xpose.msra.mxu0 0
    %1102 = vmatpush.bf16.xpose.msra.mxu0 0
    %1103 = vmatpush.bf16.xpose.msra.mxu0 0
    %1104 = vmatpush.bf16.xpose.msra.mxu0 0
    %1105 = vmatpush.bf16.xpose.msra.mxu0 %v1095
    %1106 = vmatmul.bf16.gmra.mxu0 %v1093
    %v1107 = vpop.f32.mrf.mxu0
    %v1108 = vadd.f32 0.0, %v1107
    %v1109 = vpop.f32.mrf.mxu0
    %1110 = vdwg.mxu0
    %v1111 = vmul.f32 %v1108, 0.35355338
    %v1112 = vsel %vm368, %v1111, -inf
    %1113 = vmax.xlane.f32.xlu0 %v1112
    %v1114 = vpop.xlane.xlu0 %1113
    %v1115 = vsub.f32 %v1111, %v1114
    %v1116 = vmul.f32 %v1115, 1.442695
    %v1117 = vpow.pop %v1116
    %v1118 = vsel %vm368, %v1117, 0.0
    %1119 = vadd.xlane.f32.xlu0 %v1118
    %v1120 = vpop.xlane.xlu0 %1119
    %v1121 = vrcp.pop %v1120
    %v1122 = vmul.f32 %v1117, %v1121
    %v1123 = vpack.c.bf16 %v1122, %v1122
    %v1124 = vmul.f32 %v1077, %v75
    %v1125 = vpack.c.bf16 %v1124, %v1124
    %v1126 = vmul.f32 %v1090, %v75
    %v1127 = vpack.c.bf16 %v1126, %v1126
    %1128 = vmatpush.bf16.xpose.msra.mxu0 0
    %1129 = vmatpush.bf16.xpose.msra.mxu0 0
    %1130 = vmatpush.bf16.xpose.msra.mxu0 0
    %1131 = vmatpush.bf16.xpose.msra.mxu0 0
    %1132 = vmatpush.bf16.xpose.msra.mxu0 0
    %1133 = vmatpush.bf16.xpose.msra.mxu0 0
    %1134 = vmatpush.bf16.xpose.msra.mxu0 0
    %1135 = vmatpush.bf16.xpose.msra.mxu0 %v1125
    %1136 = vmatmul.bf16.gmra.mxu0 %v1093
    %v1137 = vpop.f32.mrf.mxu0
    %v1138 = vadd.f32 0.0, %v1137
    %v1139 = vpop.f32.mrf.mxu0
    %1140 = vdwg.mxu0
    %v1141 = vmul.f32 %v1138, 0.35355338
    %v1142 = vsel %vm368, %v1141, -inf
    %1143 = vmax.xlane.f32.xlu0 %v1142
    %v1144 = vpop.xlane.xlu0 %1143
    %v1145 = vsub.f32 %v1141, %v1144
    %v1146 = vmul.f32 %v1145, 1.442695
    %v1147 = vpow.pop %v1146
    %v1148 = vsel %vm368, %v1147, 0.0
    %1149 = vadd.xlane.f32.xlu0 %v1148
    %v1150 = vpop.xlane.xlu0 %1149
    %v1151 = vrcp.pop %v1150
    %v1152 = vmul.f32 %v1147, %v1151
    %v1153 = vpack.c.bf16 %v1152, %v1152
    %v1155 = vsel %vm368, %v1153, 0
    %v1158 = vsel %vm414, %v1127, 0
    %1160 = vmatpush.bf16.msra.mxu0 0
    %1161 = vmatpush.bf16.msra.mxu0 0
    %1162 = vmatpush.bf16.msra.mxu0 0
    %1163 = vmatpush.bf16.msra.mxu0 0
    %1164 = vmatpush.bf16.msra.mxu0 0
    %1165 = vmatpush.bf16.msra.mxu0 0
    %1166 = vmatpush.bf16.msra.mxu0 0
    %1167 = vmatpush.bf16.msra.mxu0 %v1158
    %1168 = vmatmul.bf16.gmra.mxu0 %v1155
    %v1169 = vpop.f32.mrf.mxu0
    %v1170 = vadd.f32 0.0, %v1169
    %v1171 = vpop.f32.mrf.mxu0
    %1172 = vdwg.mxu0
    %v1174 = vsel %vm368, %v1123, 0
    %v1177 = vsel %vm414, %v1097, 0
    %1179 = vmatpush.bf16.msra.mxu0 0
    %1180 = vmatpush.bf16.msra.mxu0 0
    %1181 = vmatpush.bf16.msra.mxu0 0
    %1182 = vmatpush.bf16.msra.mxu0 0
    %1183 = vmatpush.bf16.msra.mxu0 0
    %1184 = vmatpush.bf16.msra.mxu0 0
    %1185 = vmatpush.bf16.msra.mxu0 0
    %1186 = vmatpush.bf16.msra.mxu0 %v1177
    %1187 = vmatmul.bf16.gmra.mxu0 %v1174
    %v1188 = vpop.f32.mrf.mxu0
    %v1189 = vadd.f32 %v1170, %v1188
    %v1190 = vpop.f32.mrf.mxu0
    %1191 = vdwg.mxu0
    %v1192 = vmul.f32 %v1077, %v80
    %v1193 = vpack.c.bf16 %v1192, %v1192
    %v1194 = vmul.f32 %v1090, %v80
    %v1195 = vpack.c.bf16 %v1194, %v1194
    %1196 = vmatpush.bf16.xpose.msra.mxu0 0
    %1197 = vmatpush.bf16.xpose.msra.mxu0 0
    %1198 = vmatpush.bf16.xpose.msra.mxu0 0
    %1199 = vmatpush.bf16.xpose.msra.mxu0 0
    %1200 = vmatpush.bf16.xpose.msra.mxu0 0
    %1201 = vmatpush.bf16.xpose.msra.mxu0 0
    %1202 = vmatpush.bf16.xpose.msra.mxu0 0
    %1203 = vmatpush.bf16.xpose.msra.mxu0 %v1193
    %1204 = vmatmul.bf16.gmra.mxu0 %v1093
    %v1205 = vpop.f32.mrf.mxu0
    %v1206 = vadd.f32 0.0, %v1205
    %v1207 = vpop.f32.mrf.mxu0
    %1208 = vdwg.mxu0
    %v1209 = vmul.f32 %v1206, 0.35355338
    %v1210 = vsel %vm368, %v1209, -inf
    %1211 = vmax.xlane.f32.xlu0 %v1210
    %v1212 = vpop.xlane.xlu0 %1211
    %v1213 = vsub.f32 %v1209, %v1212
    %v1214 = vmul.f32 %v1213, 1.442695
    %v1215 = vpow.pop %v1214
    %v1216 = vsel %vm368, %v1215, 0.0
    %1217 = vadd.xlane.f32.xlu0 %v1216
    %v1218 = vpop.xlane.xlu0 %1217
    %v1219 = vrcp.pop %v1218
    %v1220 = vmul.f32 %v1215, %v1219
    %v1221 = vpack.c.bf16 %v1220, %v1220
    %v1223 = vsel %vm368, %v1221, 0
    %v1226 = vsel %vm414, %v1195, 0
    %1228 = vmatpush.bf16.msra.mxu0 0
    %1229 = vmatpush.bf16.msra.mxu0 0
    %1230 = vmatpush.bf16.msra.mxu0 0
    %1231 = vmatpush.bf16.msra.mxu0 0
    %1232 = vmatpush.bf16.msra.mxu0 0
    %1233 = vmatpush.bf16.msra.mxu0 0
    %1234 = vmatpush.bf16.msra.mxu0 0
    %1235 = vmatpush.bf16.msra.mxu0 %v1226
    %1236 = vmatmul.bf16.gmra.mxu0 %v1223
    %v1237 = vpop.f32.mrf.mxu0
    %v1238 = vadd.f32 0.0, %v1237
    %v1239 = vpop.f32.mrf.mxu0
    %1240 = vdwg.mxu0
    %v1241 = vadd.f32 %v1189, %v1238
    %v1242 = vmul.f32 %v1077, %v84
    %v1243 = vpack.c.bf16 %v1242, %v1242
    %v1244 = vmul.f32 %v1090, %v84
    %v1245 = vpack.c.bf16 %v1244, %v1244
    %1246 = vmatpush.bf16.xpose.msra.mxu0 0
    %1247 = vmatpush.bf16.xpose.msra.mxu0 0
    %1248 = vmatpush.bf16.xpose.msra.mxu0 0
    %1249 = vmatpush.bf16.xpose.msra.mxu0 0
    %1250 = vmatpush.bf16.xpose.msra.mxu0 0
    %1251 = vmatpush.bf16.xpose.msra.mxu0 0
    %1252 = vmatpush.bf16.xpose.msra.mxu0 0
    %1253 = vmatpush.bf16.xpose.msra.mxu0 %v1243
    %1254 = vmatmul.bf16.gmra.mxu0 %v1093
    %v1255 = vpop.f32.mrf.mxu0
    %v1256 = vadd.f32 0.0, %v1255
    %v1257 = vpop.f32.mrf.mxu0
    %1258 = vdwg.mxu0
    %v1259 = vmul.f32 %v1256, 0.35355338
    %v1260 = vsel %vm368, %v1259, -inf
    %1261 = vmax.xlane.f32.xlu0 %v1260
    %v1262 = vpop.xlane.xlu0 %1261
    %v1263 = vsub.f32 %v1259, %v1262
    %v1264 = vmul.f32 %v1263, 1.442695
    %v1265 = vpow.pop %v1264
    %v1266 = vsel %vm368, %v1265, 0.0
    %1267 = vadd.xlane.f32.xlu0 %v1266
    %v1268 = vpop.xlane.xlu0 %1267
    %v1269 = vrcp.pop %v1268
    %v1270 = vmul.f32 %v1265, %v1269
    %v1271 = vpack.c.bf16 %v1270, %v1270
    %v1273 = vsel %vm368, %v1271, 0
    %v1276 = vsel %vm414, %v1245, 0
    %1278 = vmatpush.bf16.msra.mxu0 0
    %1279 = vmatpush.bf16.msra.mxu0 0
    %1280 = vmatpush.bf16.msra.mxu0 0
    %1281 = vmatpush.bf16.msra.mxu0 0
    %1282 = vmatpush.bf16.msra.mxu0 0
    %1283 = vmatpush.bf16.msra.mxu0 0
    %1284 = vmatpush.bf16.msra.mxu0 0
    %1285 = vmatpush.bf16.msra.mxu0 %v1276
    %1286 = vmatmul.bf16.gmra.mxu0 %v1273
    %v1287 = vpop.f32.mrf.mxu0
    %v1288 = vadd.f32 0.0, %v1287
    %v1289 = vpop.f32.mrf.mxu0
    %1290 = vdwg.mxu0
    %v1291 = vadd.f32 %v1241, %v1288
    %v1292 = vpack.c.bf16 %v1291, %v1291
    %v1309 = vunpack.c.l.b16 %v861
    %v1310 = vunpack.c.l.b16 %v862
    %v1311 = vunpack.c.l.b16 %v863
    %v1312 = vunpack.c.l.b16 %v864
    %v1313 = vunpack.c.l.b16 %v865
    %v1314 = vunpack.c.l.b16 %v866
    %v1315 = vunpack.c.l.b16 %v867
    %v1316 = vunpack.c.l.b16 %v868
    %v1317 = vunpack.c.l.b16 %v869
    %v1318 = vunpack.c.l.b16 %v870
    %v1319 = vunpack.c.l.b16 %v871
    %v1320 = vunpack.c.l.b16 %v872
    %v1321 = vunpack.c.l.b16 %v873
    %v1322 = vunpack.c.l.b16 %v874
    %v1323 = vunpack.c.l.b16 %v875
    %v1324 = vunpack.c.l.b16 %v876
    %v1325 = vpack.c.b16 %v1310, %v1309
    %v1326 = vpack.c.b16 %v1312, %v1311
    %v1327 = vpack.c.b16 %v1314, %v1313
    %v1328 = vpack.c.b16 %v1316, %v1315
    %v1329 = vpack.c.b16 %v1318, %v1317
    %v1330 = vpack.c.b16 %v1320, %v1319
    %v1331 = vpack.c.b16 %v1322, %v1321
    %v1332 = vpack.c.b16 %v1324, %v1323
    %1341 = vmatpush.bf16.msra.mxu0 %v1332
    %1342 = vmatpush.bf16.msra.mxu0 %v1331
    %1343 = vmatpush.bf16.msra.mxu0 %v1330
    %1344 = vmatpush.bf16.msra.mxu0 %v1329
    %1345 = vmatpush.bf16.msra.mxu0 %v1328
    %1346 = vmatpush.bf16.msra.mxu0 %v1327
    %1347 = vmatpush.bf16.msra.mxu0 %v1326
    %1348 = vmatpush.bf16.msra.mxu0 %v1325
    %1349 = vmatmul.bf16.gmra.mxu0 %v1292
    %v1350 = vpop.f32.mrf.mxu0
    %v1351 = vadd.f32 %v911, %v1350
    %v1352 = vpop.f32.mrf.mxu0
    %1353 = vdwg.mxu0
    %v1354 = vadd.f32 %v1351, %v827
    %1355 = vadd.xlane.f32.xlu0 %v1354
    %v1356 = vpop.xlane.xlu0 %1355
    %v1357 = vmul.f32 %v1356, 0.03125
    %v1358 = vsub.f32 %v1354, %v1357
    %v1359 = vmul.f32 %v1358, %v65
    %v1360 = vmul.f32 %v1359, %v1359
    %1361 = vadd.xlane.f32.xlu0 %v1360
    %v1362 = vpop.xlane.xlu0 %1361
    %v1363 = vmul.f32 %v1362, 0.03125
    %v1364 = vadd.f32 %v1363, 1e-12
    %v1365 = vrsqrt.pop %v1364
    %v1366 = vmul.f32 %v1365, %v1364
    %v1367 = vmul.f32 %v1366, %v1365
    %v1368 = vmul.f32 0.5, %v1367
    %v1369 = vsub.f32 1.5, %v1368
    %v1370 = vmul.f32 %v1365, %v1369
    %vm1371 = vweird.f32 %v1364
    %vm1372 = vweird.f32 %v1365
    %vm1373 = vmor %vm1371, %vm1372
    %v1374 = vsel %vm1373, %v1365, %v1370
    %v1375 = vmul.f32 %v1359, %v1374
    %v1376 = vmul.f32 %v1375, %v912
    %v1377 = vadd.f32 %v1376, %v913
    %v1378 = vpack.c.bf16 %v1377, %v1377
    %v1395 = vunpack.c.l.b16 %v877
    %v1396 = vunpack.c.l.b16 %v878
    %v1397 = vunpack.c.l.b16 %v879
    %v1398 = vunpack.c.l.b16 %v880
    %v1399 = vunpack.c.l.b16 %v881
    %v1400 = vunpack.c.l.b16 %v882
    %v1401 = vunpack.c.l.b16 %v883
    %v1402 = vunpack.c.l.b16 %v884
    %v1403 = vunpack.c.l.b16 %v885
    %v1404 = vunpack.c.l.b16 %v886
    %v1405 = vunpack.c.l.b16 %v887
    %v1406 = vunpack.c.l.b16 %v888
    %v1407 = vunpack.c.l.b16 %v889
    %v1408 = vunpack.c.l.b16 %v890
    %v1409 = vunpack.c.l.b16 %v891
    %v1410 = vunpack.c.l.b16 %v892
    %v1411 = vpack.c.b16 %v1396, %v1395
    %v1412 = vpack.c.b16 %v1398, %v1397
    %v1413 = vpack.c.b16 %v1400, %v1399
    %v1414 = vpack.c.b16 %v1402, %v1401
    %v1415 = vpack.c.b16 %v1404, %v1403
    %v1416 = vpack.c.b16 %v1406, %v1405
    %v1417 = vpack.c.b16 %v1408, %v1407
    %v1418 = vpack.c.b16 %v1410, %v1409
    %1427 = vmatpush.bf16.msra.mxu0 %v1418
    %1428 = vmatpush.bf16.msra.mxu0 %v1417
    %1429 = vmatpush.bf16.msra.mxu0 %v1416
    %1430 = vmatpush.bf16.msra.mxu0 %v1415
    %1431 = vmatpush.bf16.msra.mxu0 %v1414
    %1432 = vmatpush.bf16.msra.mxu0 %v1413
    %1433 = vmatpush.bf16.msra.mxu0 %v1412
    %1434 = vmatpush.bf16.msra.mxu0 %v1411
    %1435 = vmatmul.bf16.gmra.mxu0 %v1378
    %v1436 = vpop.f32.mrf.mxu0
    %v1437 = vadd.f32 %v914, %v1436
    %v1438 = vpop.f32.mrf.mxu0
    %1439 = vdwg.mxu0
    %v1440 = vmul.f32 %v1437, 0.5
    %v1441 = vmul.f32 %v1437, 0.70710677
    %v1442 = vmul.f32 %v1441, %v1441
    %v1443 = vmin.f32 16.0, %v1442
    %v1444 = vmul.f32 %v1443, 2.1237322e-06
    %v1445 = vadd.f32 %v1444, 0.00028619796
    %v1446 = vmul.f32 %v1443, %v1445
    %v1447 = vadd.f32 %v1446, 0.0036580483
    %v1448 = vmul.f32 %v1443, %v1447
    %v1449 = vadd.f32 %v1448, 0.05243302
    %v1450 = vmul.f32 %v1443, %v1449
    %v1451 = vadd.f32 %v1450, 0.18741608
    %v1452 = vmul.f32 %v1443, %v1451
    %v1453 = vadd.f32 %v1452, 1.1283791
    %v1454 = vmul.f32 %v1441, %v1453
    %v1455 = vmul.f32 %v1443, 3.8918573e-05
    %v1456 = vadd.f32 %v1455, 0.001143296
    %v1457 = vmul.f32 %v1443, %v1456
    %v1458 = vadd.f32 %v1457, 0.014752088
    %v1459 = vmul.f32 %v1443, %v1458
    %v1460 = vadd.f32 %v1459, 0.112945676
    %v1461 = vmul.f32 %v1443, %v1460
    %v1462 = vadd.f32 %v1461, 0.4994258
    %v1463 = vmul.f32 %v1443, %v1462
    %v1464 = vadd.f32 %v1463, 1.0
    %v1465 = vrcp.pop %v1464
    %v1466 = vmul.f32 %v1464, %v1465
    %v1467 = vsub.f32 1.0, %v1466
    %v1468 = vmul.f32 %v1465, %v1467
    %v1469 = vadd.f32 %v1465, %v1468
    %vm1470 = vweird.f32 %v1464
    %vm1471 = vweird.f32 %v1465
    %vm1472 = vmor %vm1470, %vm1471
    %v1473 = vsel %vm1472, %v1465, %v1469
    %v1474 = vand.u32 2147483647, %v1464
    %vm1475 = vcmp.eq.f32.partialorder %v1474, 8.507059e+37
    %v1476 = vand.u32 %v1464, 2147483648
    %v1477 = vor.u32 1.1754944e-38, %v1476
    %v1478 = vsel %vm1475, %v1477, %v1473
    %v1479 = vmul.f32 %v1454, %v1478
    %v1480 = vmin.f32 %v1479, 1.0
    %v1481 = vmax.f32 %v1480, -1.0
    %v1482 = vadd.f32 %v1481, 1.0
    %v1483 = vmul.f32 %v1440, %v1482
    %v1484 = vpack.c.bf16 %v1483, %v1483
    %v1501 = vunpack.c.l.b16 %v893
    %v1502 = vunpack.c.l.b16 %v894
    %v1503 = vunpack.c.l.b16 %v895
    %v1504 = vunpack.c.l.b16 %v896
    %v1505 = vunpack.c.l.b16 %v897
    %v1506 = vunpack.c.l.b16 %v898
    %v1507 = vunpack.c.l.b16 %v899
    %v1508 = vunpack.c.l.b16 %v900
    %v1509 = vunpack.c.l.b16 %v901
    %v1510 = vunpack.c.l.b16 %v902
    %v1511 = vunpack.c.l.b16 %v903
    %v1512 = vunpack.c.l.b16 %v904
    %v1513 = vunpack.c.l.b16 %v905
    %v1514 = vunpack.c.l.b16 %v906
    %v1515 = vunpack.c.l.b16 %v907
    %v1516 = vunpack.c.l.b16 %v908
    %v1517 = vpack.c.b16 %v1502, %v1501
    %v1518 = vpack.c.b16 %v1504, %v1503
    %v1519 = vpack.c.b16 %v1506, %v1505
    %v1520 = vpack.c.b16 %v1508, %v1507
    %v1521 = vpack.c.b16 %v1510, %v1509
    %v1522 = vpack.c.b16 %v1512, %v1511
    %v1523 = vpack.c.b16 %v1514, %v1513
    %v1524 = vpack.c.b16 %v1516, %v1515
    %1533 = vmatpush.bf16.msra.mxu0 %v1524
    %1534 = vmatpush.bf16.msra.mxu0 %v1523
    %1535 = vmatpush.bf16.msra.mxu0 %v1522
    %1536 = vmatpush.bf16.msra.mxu0 %v1521
    %1537 = vmatpush.bf16.msra.mxu0 %v1520
    %1538 = vmatpush.bf16.msra.mxu0 %v1519
    %1539 = vmatpush.bf16.msra.mxu0 %v1518
    %1540 = vmatpush.bf16.msra.mxu0 %v1517
    %1541 = vmatmul.bf16.gmra.mxu0 %v1484
    %v1542 = vpop.f32.mrf.mxu0
    %v1543 = vadd.f32 %v915, %v1542
    %v1544 = vpop.f32.mrf.mxu0
    %1545 = vdwg.mxu0
    %v1546 = vadd.f32 %v1543, %v1377
    %1547 = vadd.xlane.f32.xlu0 %v1546
    %v1548 = vpop.xlane.xlu0 %1547
    %v1549 = vmul.f32 %v1548, 0.03125
    %v1550 = vsub.f32 %v1546, %v1549
    %v1551 = vmul.f32 %v1550, %v65
    %v1552 = vmul.f32 %v1551, %v1551
    %1553 = vadd.xlane.f32.xlu0 %v1552
    %v1554 = vpop.xlane.xlu0 %1553
    %v1555 = vmul.f32 %v1554, 0.03125
    %v1556 = vadd.f32 %v1555, 1e-12
    %v1557 = vrsqrt.pop %v1556
    %v1558 = vmul.f32 %v1557, %v1556
    %v1559 = vmul.f32 %v1558, %v1557
    %v1560 = vmul.f32 0.5, %v1559
    %v1561 = vsub.f32 1.5, %v1560
    %v1562 = vmul.f32 %v1557, %v1561
    %vm1563 = vweird.f32 %v1556
    %vm1564 = vweird.f32 %v1557
    %vm1565 = vmor %vm1563, %vm1564
    %v1566 = vsel %vm1565, %v1557, %v1562
    %v1567 = vmul.f32 %v1551, %v1566
    %v1568 = vmul.f32 %v1567, %v916
    %v1569 = vadd.f32 %v1568, %v917
    %1570 = vst [vmem:[#allocation8] sm:$0xff] %v1569
    // Predicated region
    $region26: #{tpu_custom_call.1} parent=1 // pred_check
      _
    $region27: #{tpu_custom_call.1} parent=1 // pred_check_branch
      %1572 = sbr.rel (0) target = $region29
    $region28: #{tpu_custom_call.1} parent=1 // pred_region
      %1574 = vsyncadd [#allocation4], 0
      %s1576 = sshll.u32 [#allocation8], 4
      %s1577 = int_to_ptr.vmem [resolvable:$true] %s1576
      %s1578 = sshll.u32 %s3, 4
      %s1579 = int_to_ptr.hbm [resolvable:$true] %s1578
      %1581 = dma.vmem_to_hbm [thread:$0]  %s1577, 128, %s1579, [#allocation4]
    $region29: #{tpu_custom_call.1} parent=1 // pred_fallthru
      _
    // Predicated region
    $region30: #{tpu_custom_call.1} parent=1 // pred_check
      _
    $region31: #{tpu_custom_call.1} parent=1 // pred_check_branch
      %1583 = sbr.rel (0) target = $region33
    $region32: #{tpu_custom_call.1} parent=1 // pred_region
      %1585 = dma.done [#allocation4], 128
    $region33: #{tpu_custom_call.1} parent=1 // pred_fallthru
      _
    %1586 = vsyncpa [#allocation3], 1
    %1587 = vsyncpa [#allocation6], 1
    %1588 = vsyncpa [#allocation4], 1

</llo_original>
